<compile_context>
chip_gen: v6e
topology: v6e:2x2x1
jax: 0.10.0
libtpu: 0.0.40
codegen_flags: <defaults>
</compile_context>

<pallas_src>
import functools

import jax
import jax.numpy as jnp
from jax import lax
from jax.experimental import pallas as pl
from jax.experimental.pallas import tpu as pltpu


_LANES = 128


def _round_up(a, m):
    return (a + m - 1) // m * m


def _cnn_kernel(w_ref, b_ref, x_ref, out_ref, *, n_out, n_in, ksize, lout, n_sub):
    """Fused Conv1d + ReLU + max-pool (+bias) for one tile of TB = n_sub*128 words.

    w_ref:   (n_out*n_in*ksize,) f32, SMEM (scalar-prefetched), flattened [(o*C + c)*K + j]
    b_ref:   (n_out, 1)          f32, VMEM (added once after the max-pool)
    x_ref:   (n_in, L, TB)       activations (bf16 or f32), words on the 128-lane axis
    out_ref: (n_out, TB)         f32, relu(max_t conv_t + bias) per (channel, word)
    """

    def compute_sub(col):
        # ---- Conv as statically-unrolled shifted MACs over one 128-lane sub-tile ----
        accs = [None] * n_out
        for c in range(n_in):
            # Hoisted load + convert: one (L, 128) f32 slab per channel (C converts per
            # sub-tile instead of C*K); window shifts are register-resident sublane slices
            # (realign work lands on the XLU, which has slack vs. the binding VALU slot).
            slab = x_ref[c, :, pl.ds(col, _LANES)].astype(jnp.float32)       # (L, 128)
            for j in range(ksize):
                tap = slab[j:j + lout, :]                                    # (lout, 128)
                for o in range(n_out):
                    # NOTE: scalar weights come straight from SMEM; pre-broadcasting them
                    # into VMEM is only worth it if the splats show up on the VALU slot.
                    contrib = w_ref[(o * n_in + c) * ksize + j] * tap
                    accs[o] = contrib if accs[o] is None else accs[o] + contrib

        # ---- max over conv positions (sublane/XLU reduce), then bias + ReLU once ----
        # max_t relu(conv_t + b) == relu(max_t conv_t + b): exact reassociation, applied
        # once on the (n_out, 128) slab instead of on every (lout, 128) accumulator.
        rows = [jnp.max(a, axis=0, keepdims=True) for a in accs]             # n_out x (1,128)
        slab_out = jnp.concatenate(rows, axis=0) + b_ref[...]                # (n_out, 128)
        slab_out = jnp.maximum(slab_out, 0.0)
        out_ref[:, pl.ds(col, _LANES)] = slab_out.astype(out_ref.dtype)      # unmasked vst

    if n_sub == 1:
        compute_sub(0)
    else:
        def body(s, carry):
            compute_sub(pl.multiple_of(s * _LANES, _LANES))
            return carry
        lax.fori_loop(0, n_sub, body, 0)


@functools.partial(jax.jit, static_argnames=("block_b",))
def cnn_forward_clb(xt, weight, bias, *, block_b=512):
    """Kernel-layout entry point.

    xt: (C, L, B) activations already in (channels, length, words) layout (bf16 recommended
    on the wire) -- producers that can emit this layout skip the HBM relayout entirely.
    Returns (O, B) f32 of maxpool(relu(conv1d)).
    """
    C, L, B = xt.shape
    O, Cw, K = weight.shape
    assert Cw == C and L >= K, (xt.shape, weight.shape)
    lout = L - K + 1

    # ---- tile selection --------------------------------------------------------------
    # VMEM is not the constraint (per-step footprint ~100 KB double-buffered, far under
    # v7x's 64 MiB).  Choose the tile width for:
    #   (a) step-overhead amortization: several 128-lane sub-tiles per grid step, walked
    #       by an in-kernel fori_loop so vreg pressure stays at the 1-sub-tile working set;
    #   (b) >= 2 parallel grid steps when B allows it, so v7x's two TensorCores both work.
    b128 = _round_up(B, _LANES)
    n128 = b128 // _LANES
    max_sub = max(1, block_b // _LANES)
    if n128 >= 2:
        max_sub = max(1, min(max_sub, n128 // 2))
    n_sub = max(1, min(max_sub, n128))
    tb = n_sub * _LANES
    b_pad = _round_up(B, tb)
    grid = b_pad // tb

    if b_pad != B:
        xt = jnp.pad(xt, ((0, 0), (0, 0), (0, b_pad - B)))   # zero-pad words (lane axis)

    w_flat = weight.reshape(-1).astype(jnp.float32)          # (O*C*K,) -> SMEM scalar prefetch
    bias_col = bias.reshape(O, 1).astype(jnp.float32)        # (O, 1)   -> VMEM, post-pool add

    kernel = functools.partial(_cnn_kernel, n_out=O, n_in=C, ksize=K, lout=lout,
                               n_sub=n_sub)

    in_bytes = xt.size * xt.dtype.itemsize + w_flat.size * 4 + bias_col.size * 4
    out_bytes = O * b_pad * 4

    out = pl.pallas_call(
        kernel,
        out_shape=jax.ShapeDtypeStruct((O, b_pad), jnp.float32),
        grid_spec=pltpu.PrefetchScalarGridSpec(
            num_scalar_prefetch=1,                            # conv weights -> SMEM, once
            grid=(grid,),
            in_specs=[
                pl.BlockSpec((O, 1), lambda i, w: (0, 0)),         # bias column
                pl.BlockSpec((C, L, tb), lambda i, w: (0, 0, i)),  # activations tile
            ],
            out_specs=pl.BlockSpec((O, tb), lambda i, w: (0, i)),  # lane-dense output
        ),
        compiler_params=pltpu.CompilerParams(
            dimension_semantics=("parallel",)),
        cost_estimate=pl.CostEstimate(
            flops=2 * b_pad * lout * C * K * O,
            transcendentals=0,
            bytes_accessed=in_bytes + out_bytes),
    )(w_flat, bias_col, xt)

    # Padded words (lanes >= B) compute relu(bias) independently; just drop them.
    return out[:, :B]


@functools.partial(jax.jit, static_argnames=("block_b", "compute_dtype"))
def cnn_forward(x, weight, bias, *, block_b=512, compute_dtype=jnp.bfloat16):
    """x: (B, C, L) NCL (like nn.Conv1d); weight: (O, C, K); bias: (O,) -> (B, O, 1)."""
    # TODO(synk): for large B, have the upstream producer emit (C, L, B) bf16 directly and
    # call cnn_forward_clb -- this transpose is a full HBM relayout pass (dominant HBM cost
    # for big B, worst on v5e) that the kernel itself does not need.
    xt = jnp.transpose(x, (1, 2, 0)).astype(compute_dtype)
    out = cnn_forward_clb(xt, weight, bias, block_b=block_b)   # (O, B)
    return out.T[:, :, None]                                   # (B, O, 1)


def _reference(x, weight, bias):
    """Pure-JAX reference matching nn.Conv1d -> ReLU -> MaxPool1d (full f32 precision)."""
    conv = jax.lax.conv_general_dilated(
        x, weight, window_strides=(1,), padding="VALID",
        dimension_numbers=("NCH", "OIH", "NCH"),
        precision=jax.lax.Precision.HIGHEST)
    conv = conv + bias[None, :, None]
    conv = jnp.maximum(conv, 0.0)
    return jnp.max(conv, axis=-1, keepdims=True)


if __name__ == "__main__":
    # Deterministic parameter / input construction (synthetic, no checkpoint).
    char_embedding_size = 4
    output_embedding_size = 8
    max_word_len = 21
    k = 5
    batch = 2

    key = jax.random.PRNGKey(0)
    kx, kw, kb = jax.random.split(key, 3)

    x = jax.random.normal(kx, (batch, char_embedding_size, max_word_len), dtype=jnp.float32)
    weight = (jax.random.normal(kw, (output_embedding_size, char_embedding_size, k),
                                dtype=jnp.float32) * 0.1)
    bias = jax.random.normal(kb, (output_embedding_size,), dtype=jnp.float32) * 0.1

    out = cnn_forward(x, weight, bias)
    out = jax.block_until_ready(out)

    # Reference on the same bf16-quantized activations (kernel streams bf16, accumulates f32).
    x_q = x.astype(jnp.bfloat16).astype(jnp.float32)
    ref = _reference(x_q, weight, bias)

    assert out.shape == (batch, output_embedding_size, 1), out.shape
    assert jnp.allclose(out, ref, atol=1e-4, rtol=1e-4), (
        "mismatch vs reference, max abs err = %e" % float(jnp.max(jnp.abs(out - ref))))

    print("KERNEL_OK")
</pallas_src>

<mosaic_0001>
module attributes {stable_mosaic.version = 11 : i64} {
  func.func @_cnn_kernel(%arg0: i32, %arg1: memref<160xf32, #tpu.memory_space<smem>>, %arg2: memref<8x1xf32, #tpu.memory_space<vmem>>, %arg3: memref<4x21x128xbf16, #tpu.memory_space<vmem>>, %arg4: memref<8x128xf32, #tpu.memory_space<vmem>>) attributes {dimension_semantics = [#tpu.dimension_semantics<parallel>], iteration_bounds = array<i64: 1>, scalar_prefetch = 1 : i64, scratch_operands = 0 : i64, tpu.core_type = #tpu.core_type<tc>, window_params = [{pipeline_mode = #tpu.pipeline_mode<synchronous>, transform_indices = @transform_0, window_bounds = array<i64: 8, 1>}, {transform_indices = @transform_1, window_bounds = array<i64: 4, 21, 128>}, {transform_indices = @transform_2, window_bounds = array<i64: 8, 128>}]} {
    %c0 = arith.constant 0 : index
    %c0_0 = arith.constant 0 : index
    %c0_1 = arith.constant 0 : index
    %0 = vector.load %arg3[%c0, %c0_0, %c0_1] : memref<4x21x128xbf16, #tpu.memory_space<vmem>>, vector<1x21x128xbf16>
    %1 = vector.shape_cast %0 : vector<1x21x128xbf16> to vector<21x128xbf16>
    %2 = arith.extf %1 : vector<21x128xbf16> to vector<21x128xf32>
    %3 = vector.extract_strided_slice %2 {offsets = [0, 0], sizes = [17, 128], strides = [1, 1]} : vector<21x128xf32> to vector<17x128xf32>
    %c0_2 = arith.constant 0 : index
    %4 = memref.load %arg1[%c0_2] : memref<160xf32, #tpu.memory_space<smem>>
    %5 = vector.broadcast %4 : f32 to vector<17x128xf32>
    %6 = arith.mulf %5, %3 : vector<17x128xf32>
    %c20 = arith.constant 20 : index
    %7 = memref.load %arg1[%c20] : memref<160xf32, #tpu.memory_space<smem>>
    %8 = vector.broadcast %7 : f32 to vector<17x128xf32>
    %9 = arith.mulf %8, %3 : vector<17x128xf32>
    %c40 = arith.constant 40 : index
    %10 = memref.load %arg1[%c40] : memref<160xf32, #tpu.memory_space<smem>>
    %11 = vector.broadcast %10 : f32 to vector<17x128xf32>
    %12 = arith.mulf %11, %3 : vector<17x128xf32>
    %c60 = arith.constant 60 : index
    %13 = memref.load %arg1[%c60] : memref<160xf32, #tpu.memory_space<smem>>
    %14 = vector.broadcast %13 : f32 to vector<17x128xf32>
    %15 = arith.mulf %14, %3 : vector<17x128xf32>
    %c80 = arith.constant 80 : index
    %16 = memref.load %arg1[%c80] : memref<160xf32, #tpu.memory_space<smem>>
    %17 = vector.broadcast %16 : f32 to vector<17x128xf32>
    %18 = arith.mulf %17, %3 : vector<17x128xf32>
    %c100 = arith.constant 100 : index
    %19 = memref.load %arg1[%c100] : memref<160xf32, #tpu.memory_space<smem>>
    %20 = vector.broadcast %19 : f32 to vector<17x128xf32>
    %21 = arith.mulf %20, %3 : vector<17x128xf32>
    %c120 = arith.constant 120 : index
    %22 = memref.load %arg1[%c120] : memref<160xf32, #tpu.memory_space<smem>>
    %23 = vector.broadcast %22 : f32 to vector<17x128xf32>
    %24 = arith.mulf %23, %3 : vector<17x128xf32>
    %c140 = arith.constant 140 : index
    %25 = memref.load %arg1[%c140] : memref<160xf32, #tpu.memory_space<smem>>
    %26 = vector.broadcast %25 : f32 to vector<17x128xf32>
    %27 = arith.mulf %26, %3 : vector<17x128xf32>
    %28 = vector.extract_strided_slice %2 {offsets = [1, 0], sizes = [17, 128], strides = [1, 1]} : vector<21x128xf32> to vector<17x128xf32>
    %c1 = arith.constant 1 : index
    %29 = memref.load %arg1[%c1] : memref<160xf32, #tpu.memory_space<smem>>
    %30 = vector.broadcast %29 : f32 to vector<17x128xf32>
    %31 = arith.mulf %30, %28 : vector<17x128xf32>
    %32 = arith.addf %6, %31 : vector<17x128xf32>
    %c21 = arith.constant 21 : index
    %33 = memref.load %arg1[%c21] : memref<160xf32, #tpu.memory_space<smem>>
    %34 = vector.broadcast %33 : f32 to vector<17x128xf32>
    %35 = arith.mulf %34, %28 : vector<17x128xf32>
    %36 = arith.addf %9, %35 : vector<17x128xf32>
    %c41 = arith.constant 41 : index
    %37 = memref.load %arg1[%c41] : memref<160xf32, #tpu.memory_space<smem>>
    %38 = vector.broadcast %37 : f32 to vector<17x128xf32>
    %39 = arith.mulf %38, %28 : vector<17x128xf32>
    %40 = arith.addf %12, %39 : vector<17x128xf32>
    %c61 = arith.constant 61 : index
    %41 = memref.load %arg1[%c61] : memref<160xf32, #tpu.memory_space<smem>>
    %42 = vector.broadcast %41 : f32 to vector<17x128xf32>
    %43 = arith.mulf %42, %28 : vector<17x128xf32>
    %44 = arith.addf %15, %43 : vector<17x128xf32>
    %c81 = arith.constant 81 : index
    %45 = memref.load %arg1[%c81] : memref<160xf32, #tpu.memory_space<smem>>
    %46 = vector.broadcast %45 : f32 to vector<17x128xf32>
    %47 = arith.mulf %46, %28 : vector<17x128xf32>
    %48 = arith.addf %18, %47 : vector<17x128xf32>
    %c101 = arith.constant 101 : index
    %49 = memref.load %arg1[%c101] : memref<160xf32, #tpu.memory_space<smem>>
    %50 = vector.broadcast %49 : f32 to vector<17x128xf32>
    %51 = arith.mulf %50, %28 : vector<17x128xf32>
    %52 = arith.addf %21, %51 : vector<17x128xf32>
    %c121 = arith.constant 121 : index
    %53 = memref.load %arg1[%c121] : memref<160xf32, #tpu.memory_space<smem>>
    %54 = vector.broadcast %53 : f32 to vector<17x128xf32>
    %55 = arith.mulf %54, %28 : vector<17x128xf32>
    %56 = arith.addf %24, %55 : vector<17x128xf32>
    %c141 = arith.constant 141 : index
    %57 = memref.load %arg1[%c141] : memref<160xf32, #tpu.memory_space<smem>>
    %58 = vector.broadcast %57 : f32 to vector<17x128xf32>
    %59 = arith.mulf %58, %28 : vector<17x128xf32>
    %60 = arith.addf %27, %59 : vector<17x128xf32>
    %61 = vector.extract_strided_slice %2 {offsets = [2, 0], sizes = [17, 128], strides = [1, 1]} : vector<21x128xf32> to vector<17x128xf32>
    %c2 = arith.constant 2 : index
    %62 = memref.load %arg1[%c2] : memref<160xf32, #tpu.memory_space<smem>>
    %63 = vector.broadcast %62 : f32 to vector<17x128xf32>
    %64 = arith.mulf %63, %61 : vector<17x128xf32>
    %65 = arith.addf %32, %64 : vector<17x128xf32>
    %c22 = arith.constant 22 : index
    %66 = memref.load %arg1[%c22] : memref<160xf32, #tpu.memory_space<smem>>
    %67 = vector.broadcast %66 : f32 to vector<17x128xf32>
    %68 = arith.mulf %67, %61 : vector<17x128xf32>
    %69 = arith.addf %36, %68 : vector<17x128xf32>
    %c42 = arith.constant 42 : index
    %70 = memref.load %arg1[%c42] : memref<160xf32, #tpu.memory_space<smem>>
    %71 = vector.broadcast %70 : f32 to vector<17x128xf32>
    %72 = arith.mulf %71, %61 : vector<17x128xf32>
    %73 = arith.addf %40, %72 : vector<17x128xf32>
    %c62 = arith.constant 62 : index
    %74 = memref.load %arg1[%c62] : memref<160xf32, #tpu.memory_space<smem>>
    %75 = vector.broadcast %74 : f32 to vector<17x128xf32>
    %76 = arith.mulf %75, %61 : vector<17x128xf32>
    %77 = arith.addf %44, %76 : vector<17x128xf32>
    %c82 = arith.constant 82 : index
    %78 = memref.load %arg1[%c82] : memref<160xf32, #tpu.memory_space<smem>>
    %79 = vector.broadcast %78 : f32 to vector<17x128xf32>
    %80 = arith.mulf %79, %61 : vector<17x128xf32>
    %81 = arith.addf %48, %80 : vector<17x128xf32>
    %c102 = arith.constant 102 : index
    %82 = memref.load %arg1[%c102] : memref<160xf32, #tpu.memory_space<smem>>
    %83 = vector.broadcast %82 : f32 to vector<17x128xf32>
    %84 = arith.mulf %83, %61 : vector<17x128xf32>
    %85 = arith.addf %52, %84 : vector<17x128xf32>
    %c122 = arith.constant 122 : index
    %86 = memref.load %arg1[%c122] : memref<160xf32, #tpu.memory_space<smem>>
    %87 = vector.broadcast %86 : f32 to vector<17x128xf32>
    %88 = arith.mulf %87, %61 : vector<17x128xf32>
    %89 = arith.addf %56, %88 : vector<17x128xf32>
    %c142 = arith.constant 142 : index
    %90 = memref.load %arg1[%c142] : memref<160xf32, #tpu.memory_space<smem>>
    %91 = vector.broadcast %90 : f32 to vector<17x128xf32>
    %92 = arith.mulf %91, %61 : vector<17x128xf32>
    %93 = arith.addf %60, %92 : vector<17x128xf32>
    %94 = vector.extract_strided_slice %2 {offsets = [3, 0], sizes = [17, 128], strides = [1, 1]} : vector<21x128xf32> to vector<17x128xf32>
    %c3 = arith.constant 3 : index
    %95 = memref.load %arg1[%c3] : memref<160xf32, #tpu.memory_space<smem>>
    %96 = vector.broadcast %95 : f32 to vector<17x128xf32>
    %97 = arith.mulf %96, %94 : vector<17x128xf32>
    %98 = arith.addf %65, %97 : vector<17x128xf32>
    %c23 = arith.constant 23 : index
    %99 = memref.load %arg1[%c23] : memref<160xf32, #tpu.memory_space<smem>>
    %100 = vector.broadcast %99 : f32 to vector<17x128xf32>
    %101 = arith.mulf %100, %94 : vector<17x128xf32>
    %102 = arith.addf %69, %101 : vector<17x128xf32>
    %c43 = arith.constant 43 : index
    %103 = memref.load %arg1[%c43] : memref<160xf32, #tpu.memory_space<smem>>
    %104 = vector.broadcast %103 : f32 to vector<17x128xf32>
    %105 = arith.mulf %104, %94 : vector<17x128xf32>
    %106 = arith.addf %73, %105 : vector<17x128xf32>
    %c63 = arith.constant 63 : index
    %107 = memref.load %arg1[%c63] : memref<160xf32, #tpu.memory_space<smem>>
    %108 = vector.broadcast %107 : f32 to vector<17x128xf32>
    %109 = arith.mulf %108, %94 : vector<17x128xf32>
    %110 = arith.addf %77, %109 : vector<17x128xf32>
    %c83 = arith.constant 83 : index
    %111 = memref.load %arg1[%c83] : memref<160xf32, #tpu.memory_space<smem>>
    %112 = vector.broadcast %111 : f32 to vector<17x128xf32>
    %113 = arith.mulf %112, %94 : vector<17x128xf32>
    %114 = arith.addf %81, %113 : vector<17x128xf32>
    %c103 = arith.constant 103 : index
    %115 = memref.load %arg1[%c103] : memref<160xf32, #tpu.memory_space<smem>>
    %116 = vector.broadcast %115 : f32 to vector<17x128xf32>
    %117 = arith.mulf %116, %94 : vector<17x128xf32>
    %118 = arith.addf %85, %117 : vector<17x128xf32>
    %c123 = arith.constant 123 : index
    %119 = memref.load %arg1[%c123] : memref<160xf32, #tpu.memory_space<smem>>
    %120 = vector.broadcast %119 : f32 to vector<17x128xf32>
    %121 = arith.mulf %120, %94 : vector<17x128xf32>
    %122 = arith.addf %89, %121 : vector<17x128xf32>
    %c143 = arith.constant 143 : index
    %123 = memref.load %arg1[%c143] : memref<160xf32, #tpu.memory_space<smem>>
    %124 = vector.broadcast %123 : f32 to vector<17x128xf32>
    %125 = arith.mulf %124, %94 : vector<17x128xf32>
    %126 = arith.addf %93, %125 : vector<17x128xf32>
    %127 = vector.extract_strided_slice %2 {offsets = [4, 0], sizes = [17, 128], strides = [1, 1]} : vector<21x128xf32> to vector<17x128xf32>
    %c4 = arith.constant 4 : index
    %128 = memref.load %arg1[%c4] : memref<160xf32, #tpu.memory_space<smem>>
    %129 = vector.broadcast %128 : f32 to vector<17x128xf32>
    %130 = arith.mulf %129, %127 : vector<17x128xf32>
    %131 = arith.addf %98, %130 : vector<17x128xf32>
    %c24 = arith.constant 24 : index
    %132 = memref.load %arg1[%c24] : memref<160xf32, #tpu.memory_space<smem>>
    %133 = vector.broadcast %132 : f32 to vector<17x128xf32>
    %134 = arith.mulf %133, %127 : vector<17x128xf32>
    %135 = arith.addf %102, %134 : vector<17x128xf32>
    %c44 = arith.constant 44 : index
    %136 = memref.load %arg1[%c44] : memref<160xf32, #tpu.memory_space<smem>>
    %137 = vector.broadcast %136 : f32 to vector<17x128xf32>
    %138 = arith.mulf %137, %127 : vector<17x128xf32>
    %139 = arith.addf %106, %138 : vector<17x128xf32>
    %c64 = arith.constant 64 : index
    %140 = memref.load %arg1[%c64] : memref<160xf32, #tpu.memory_space<smem>>
    %141 = vector.broadcast %140 : f32 to vector<17x128xf32>
    %142 = arith.mulf %141, %127 : vector<17x128xf32>
    %143 = arith.addf %110, %142 : vector<17x128xf32>
    %c84 = arith.constant 84 : index
    %144 = memref.load %arg1[%c84] : memref<160xf32, #tpu.memory_space<smem>>
    %145 = vector.broadcast %144 : f32 to vector<17x128xf32>
    %146 = arith.mulf %145, %127 : vector<17x128xf32>
    %147 = arith.addf %114, %146 : vector<17x128xf32>
    %c104 = arith.constant 104 : index
    %148 = memref.load %arg1[%c104] : memref<160xf32, #tpu.memory_space<smem>>
    %149 = vector.broadcast %148 : f32 to vector<17x128xf32>
    %150 = arith.mulf %149, %127 : vector<17x128xf32>
    %151 = arith.addf %118, %150 : vector<17x128xf32>
    %c124 = arith.constant 124 : index
    %152 = memref.load %arg1[%c124] : memref<160xf32, #tpu.memory_space<smem>>
    %153 = vector.broadcast %152 : f32 to vector<17x128xf32>
    %154 = arith.mulf %153, %127 : vector<17x128xf32>
    %155 = arith.addf %122, %154 : vector<17x128xf32>
    %c144 = arith.constant 144 : index
    %156 = memref.load %arg1[%c144] : memref<160xf32, #tpu.memory_space<smem>>
    %157 = vector.broadcast %156 : f32 to vector<17x128xf32>
    %158 = arith.mulf %157, %127 : vector<17x128xf32>
    %159 = arith.addf %126, %158 : vector<17x128xf32>
    %c1_3 = arith.constant 1 : index
    %c0_4 = arith.constant 0 : index
    %c0_5 = arith.constant 0 : index
    %160 = vector.load %arg3[%c1_3, %c0_4, %c0_5] : memref<4x21x128xbf16, #tpu.memory_space<vmem>>, vector<1x21x128xbf16>
    %161 = vector.shape_cast %160 : vector<1x21x128xbf16> to vector<21x128xbf16>
    %162 = arith.extf %161 : vector<21x128xbf16> to vector<21x128xf32>
    %163 = vector.extract_strided_slice %162 {offsets = [0, 0], sizes = [17, 128], strides = [1, 1]} : vector<21x128xf32> to vector<17x128xf32>
    %c5 = arith.constant 5 : index
    %164 = memref.load %arg1[%c5] : memref<160xf32, #tpu.memory_space<smem>>
    %165 = vector.broadcast %164 : f32 to vector<17x128xf32>
    %166 = arith.mulf %165, %163 : vector<17x128xf32>
    %167 = arith.addf %131, %166 : vector<17x128xf32>
    %c25 = arith.constant 25 : index
    %168 = memref.load %arg1[%c25] : memref<160xf32, #tpu.memory_space<smem>>
    %169 = vector.broadcast %168 : f32 to vector<17x128xf32>
    %170 = arith.mulf %169, %163 : vector<17x128xf32>
    %171 = arith.addf %135, %170 : vector<17x128xf32>
    %c45 = arith.constant 45 : index
    %172 = memref.load %arg1[%c45] : memref<160xf32, #tpu.memory_space<smem>>
    %173 = vector.broadcast %172 : f32 to vector<17x128xf32>
    %174 = arith.mulf %173, %163 : vector<17x128xf32>
    %175 = arith.addf %139, %174 : vector<17x128xf32>
    %c65 = arith.constant 65 : index
    %176 = memref.load %arg1[%c65] : memref<160xf32, #tpu.memory_space<smem>>
    %177 = vector.broadcast %176 : f32 to vector<17x128xf32>
    %178 = arith.mulf %177, %163 : vector<17x128xf32>
    %179 = arith.addf %143, %178 : vector<17x128xf32>
    %c85 = arith.constant 85 : index
    %180 = memref.load %arg1[%c85] : memref<160xf32, #tpu.memory_space<smem>>
    %181 = vector.broadcast %180 : f32 to vector<17x128xf32>
    %182 = arith.mulf %181, %163 : vector<17x128xf32>
    %183 = arith.addf %147, %182 : vector<17x128xf32>
    %c105 = arith.constant 105 : index
    %184 = memref.load %arg1[%c105] : memref<160xf32, #tpu.memory_space<smem>>
    %185 = vector.broadcast %184 : f32 to vector<17x128xf32>
    %186 = arith.mulf %185, %163 : vector<17x128xf32>
    %187 = arith.addf %151, %186 : vector<17x128xf32>
    %c125 = arith.constant 125 : index
    %188 = memref.load %arg1[%c125] : memref<160xf32, #tpu.memory_space<smem>>
    %189 = vector.broadcast %188 : f32 to vector<17x128xf32>
    %190 = arith.mulf %189, %163 : vector<17x128xf32>
    %191 = arith.addf %155, %190 : vector<17x128xf32>
    %c145 = arith.constant 145 : index
    %192 = memref.load %arg1[%c145] : memref<160xf32, #tpu.memory_space<smem>>
    %193 = vector.broadcast %192 : f32 to vector<17x128xf32>
    %194 = arith.mulf %193, %163 : vector<17x128xf32>
    %195 = arith.addf %159, %194 : vector<17x128xf32>
    %196 = vector.extract_strided_slice %162 {offsets = [1, 0], sizes = [17, 128], strides = [1, 1]} : vector<21x128xf32> to vector<17x128xf32>
    %c6 = arith.constant 6 : index
    %197 = memref.load %arg1[%c6] : memref<160xf32, #tpu.memory_space<smem>>
    %198 = vector.broadcast %197 : f32 to vector<17x128xf32>
    %199 = arith.mulf %198, %196 : vector<17x128xf32>
    %200 = arith.addf %167, %199 : vector<17x128xf32>
    %c26 = arith.constant 26 : index
    %201 = memref.load %arg1[%c26] : memref<160xf32, #tpu.memory_space<smem>>
    %202 = vector.broadcast %201 : f32 to vector<17x128xf32>
    %203 = arith.mulf %202, %196 : vector<17x128xf32>
    %204 = arith.addf %171, %203 : vector<17x128xf32>
    %c46 = arith.constant 46 : index
    %205 = memref.load %arg1[%c46] : memref<160xf32, #tpu.memory_space<smem>>
    %206 = vector.broadcast %205 : f32 to vector<17x128xf32>
    %207 = arith.mulf %206, %196 : vector<17x128xf32>
    %208 = arith.addf %175, %207 : vector<17x128xf32>
    %c66 = arith.constant 66 : index
    %209 = memref.load %arg1[%c66] : memref<160xf32, #tpu.memory_space<smem>>
    %210 = vector.broadcast %209 : f32 to vector<17x128xf32>
    %211 = arith.mulf %210, %196 : vector<17x128xf32>
    %212 = arith.addf %179, %211 : vector<17x128xf32>
    %c86 = arith.constant 86 : index
    %213 = memref.load %arg1[%c86] : memref<160xf32, #tpu.memory_space<smem>>
    %214 = vector.broadcast %213 : f32 to vector<17x128xf32>
    %215 = arith.mulf %214, %196 : vector<17x128xf32>
    %216 = arith.addf %183, %215 : vector<17x128xf32>
    %c106 = arith.constant 106 : index
    %217 = memref.load %arg1[%c106] : memref<160xf32, #tpu.memory_space<smem>>
    %218 = vector.broadcast %217 : f32 to vector<17x128xf32>
    %219 = arith.mulf %218, %196 : vector<17x128xf32>
    %220 = arith.addf %187, %219 : vector<17x128xf32>
    %c126 = arith.constant 126 : index
    %221 = memref.load %arg1[%c126] : memref<160xf32, #tpu.memory_space<smem>>
    %222 = vector.broadcast %221 : f32 to vector<17x128xf32>
    %223 = arith.mulf %222, %196 : vector<17x128xf32>
    %224 = arith.addf %191, %223 : vector<17x128xf32>
    %c146 = arith.constant 146 : index
    %225 = memref.load %arg1[%c146] : memref<160xf32, #tpu.memory_space<smem>>
    %226 = vector.broadcast %225 : f32 to vector<17x128xf32>
    %227 = arith.mulf %226, %196 : vector<17x128xf32>
    %228 = arith.addf %195, %227 : vector<17x128xf32>
    %229 = vector.extract_strided_slice %162 {offsets = [2, 0], sizes = [17, 128], strides = [1, 1]} : vector<21x128xf32> to vector<17x128xf32>
    %c7 = arith.constant 7 : index
    %230 = memref.load %arg1[%c7] : memref<160xf32, #tpu.memory_space<smem>>
    %231 = vector.broadcast %230 : f32 to vector<17x128xf32>
    %232 = arith.mulf %231, %229 : vector<17x128xf32>
    %233 = arith.addf %200, %232 : vector<17x128xf32>
    %c27 = arith.constant 27 : index
    %234 = memref.load %arg1[%c27] : memref<160xf32, #tpu.memory_space<smem>>
    %235 = vector.broadcast %234 : f32 to vector<17x128xf32>
    %236 = arith.mulf %235, %229 : vector<17x128xf32>
    %237 = arith.addf %204, %236 : vector<17x128xf32>
    %c47 = arith.constant 47 : index
    %238 = memref.load %arg1[%c47] : memref<160xf32, #tpu.memory_space<smem>>
    %239 = vector.broadcast %238 : f32 to vector<17x128xf32>
    %240 = arith.mulf %239, %229 : vector<17x128xf32>
    %241 = arith.addf %208, %240 : vector<17x128xf32>
    %c67 = arith.constant 67 : index
    %242 = memref.load %arg1[%c67] : memref<160xf32, #tpu.memory_space<smem>>
    %243 = vector.broadcast %242 : f32 to vector<17x128xf32>
    %244 = arith.mulf %243, %229 : vector<17x128xf32>
    %245 = arith.addf %212, %244 : vector<17x128xf32>
    %c87 = arith.constant 87 : index
    %246 = memref.load %arg1[%c87] : memref<160xf32, #tpu.memory_space<smem>>
    %247 = vector.broadcast %246 : f32 to vector<17x128xf32>
    %248 = arith.mulf %247, %229 : vector<17x128xf32>
    %249 = arith.addf %216, %248 : vector<17x128xf32>
    %c107 = arith.constant 107 : index
    %250 = memref.load %arg1[%c107] : memref<160xf32, #tpu.memory_space<smem>>
    %251 = vector.broadcast %250 : f32 to vector<17x128xf32>
    %252 = arith.mulf %251, %229 : vector<17x128xf32>
    %253 = arith.addf %220, %252 : vector<17x128xf32>
    %c127 = arith.constant 127 : index
    %254 = memref.load %arg1[%c127] : memref<160xf32, #tpu.memory_space<smem>>
    %255 = vector.broadcast %254 : f32 to vector<17x128xf32>
    %256 = arith.mulf %255, %229 : vector<17x128xf32>
    %257 = arith.addf %224, %256 : vector<17x128xf32>
    %c147 = arith.constant 147 : index
    %258 = memref.load %arg1[%c147] : memref<160xf32, #tpu.memory_space<smem>>
    %259 = vector.broadcast %258 : f32 to vector<17x128xf32>
    %260 = arith.mulf %259, %229 : vector<17x128xf32>
    %261 = arith.addf %228, %260 : vector<17x128xf32>
    %262 = vector.extract_strided_slice %162 {offsets = [3, 0], sizes = [17, 128], strides = [1, 1]} : vector<21x128xf32> to vector<17x128xf32>
    %c8 = arith.constant 8 : index
    %263 = memref.load %arg1[%c8] : memref<160xf32, #tpu.memory_space<smem>>
    %264 = vector.broadcast %263 : f32 to vector<17x128xf32>
    %265 = arith.mulf %264, %262 : vector<17x128xf32>
    %266 = arith.addf %233, %265 : vector<17x128xf32>
    %c28 = arith.constant 28 : index
    %267 = memref.load %arg1[%c28] : memref<160xf32, #tpu.memory_space<smem>>
    %268 = vector.broadcast %267 : f32 to vector<17x128xf32>
    %269 = arith.mulf %268, %262 : vector<17x128xf32>
    %270 = arith.addf %237, %269 : vector<17x128xf32>
    %c48 = arith.constant 48 : index
    %271 = memref.load %arg1[%c48] : memref<160xf32, #tpu.memory_space<smem>>
    %272 = vector.broadcast %271 : f32 to vector<17x128xf32>
    %273 = arith.mulf %272, %262 : vector<17x128xf32>
    %274 = arith.addf %241, %273 : vector<17x128xf32>
    %c68 = arith.constant 68 : index
    %275 = memref.load %arg1[%c68] : memref<160xf32, #tpu.memory_space<smem>>
    %276 = vector.broadcast %275 : f32 to vector<17x128xf32>
    %277 = arith.mulf %276, %262 : vector<17x128xf32>
    %278 = arith.addf %245, %277 : vector<17x128xf32>
    %c88 = arith.constant 88 : index
    %279 = memref.load %arg1[%c88] : memref<160xf32, #tpu.memory_space<smem>>
    %280 = vector.broadcast %279 : f32 to vector<17x128xf32>
    %281 = arith.mulf %280, %262 : vector<17x128xf32>
    %282 = arith.addf %249, %281 : vector<17x128xf32>
    %c108 = arith.constant 108 : index
    %283 = memref.load %arg1[%c108] : memref<160xf32, #tpu.memory_space<smem>>
    %284 = vector.broadcast %283 : f32 to vector<17x128xf32>
    %285 = arith.mulf %284, %262 : vector<17x128xf32>
    %286 = arith.addf %253, %285 : vector<17x128xf32>
    %c128 = arith.constant 128 : index
    %287 = memref.load %arg1[%c128] : memref<160xf32, #tpu.memory_space<smem>>
    %288 = vector.broadcast %287 : f32 to vector<17x128xf32>
    %289 = arith.mulf %288, %262 : vector<17x128xf32>
    %290 = arith.addf %257, %289 : vector<17x128xf32>
    %c148 = arith.constant 148 : index
    %291 = memref.load %arg1[%c148] : memref<160xf32, #tpu.memory_space<smem>>
    %292 = vector.broadcast %291 : f32 to vector<17x128xf32>
    %293 = arith.mulf %292, %262 : vector<17x128xf32>
    %294 = arith.addf %261, %293 : vector<17x128xf32>
    %295 = vector.extract_strided_slice %162 {offsets = [4, 0], sizes = [17, 128], strides = [1, 1]} : vector<21x128xf32> to vector<17x128xf32>
    %c9 = arith.constant 9 : index
    %296 = memref.load %arg1[%c9] : memref<160xf32, #tpu.memory_space<smem>>
    %297 = vector.broadcast %296 : f32 to vector<17x128xf32>
    %298 = arith.mulf %297, %295 : vector<17x128xf32>
    %299 = arith.addf %266, %298 : vector<17x128xf32>
    %c29 = arith.constant 29 : index
    %300 = memref.load %arg1[%c29] : memref<160xf32, #tpu.memory_space<smem>>
    %301 = vector.broadcast %300 : f32 to vector<17x128xf32>
    %302 = arith.mulf %301, %295 : vector<17x128xf32>
    %303 = arith.addf %270, %302 : vector<17x128xf32>
    %c49 = arith.constant 49 : index
    %304 = memref.load %arg1[%c49] : memref<160xf32, #tpu.memory_space<smem>>
    %305 = vector.broadcast %304 : f32 to vector<17x128xf32>
    %306 = arith.mulf %305, %295 : vector<17x128xf32>
    %307 = arith.addf %274, %306 : vector<17x128xf32>
    %c69 = arith.constant 69 : index
    %308 = memref.load %arg1[%c69] : memref<160xf32, #tpu.memory_space<smem>>
    %309 = vector.broadcast %308 : f32 to vector<17x128xf32>
    %310 = arith.mulf %309, %295 : vector<17x128xf32>
    %311 = arith.addf %278, %310 : vector<17x128xf32>
    %c89 = arith.constant 89 : index
    %312 = memref.load %arg1[%c89] : memref<160xf32, #tpu.memory_space<smem>>
    %313 = vector.broadcast %312 : f32 to vector<17x128xf32>
    %314 = arith.mulf %313, %295 : vector<17x128xf32>
    %315 = arith.addf %282, %314 : vector<17x128xf32>
    %c109 = arith.constant 109 : index
    %316 = memref.load %arg1[%c109] : memref<160xf32, #tpu.memory_space<smem>>
    %317 = vector.broadcast %316 : f32 to vector<17x128xf32>
    %318 = arith.mulf %317, %295 : vector<17x128xf32>
    %319 = arith.addf %286, %318 : vector<17x128xf32>
    %c129 = arith.constant 129 : index
    %320 = memref.load %arg1[%c129] : memref<160xf32, #tpu.memory_space<smem>>
    %321 = vector.broadcast %320 : f32 to vector<17x128xf32>
    %322 = arith.mulf %321, %295 : vector<17x128xf32>
    %323 = arith.addf %290, %322 : vector<17x128xf32>
    %c149 = arith.constant 149 : index
    %324 = memref.load %arg1[%c149] : memref<160xf32, #tpu.memory_space<smem>>
    %325 = vector.broadcast %324 : f32 to vector<17x128xf32>
    %326 = arith.mulf %325, %295 : vector<17x128xf32>
    %327 = arith.addf %294, %326 : vector<17x128xf32>
    %c2_6 = arith.constant 2 : index
    %c0_7 = arith.constant 0 : index
    %c0_8 = arith.constant 0 : index
    %328 = vector.load %arg3[%c2_6, %c0_7, %c0_8] : memref<4x21x128xbf16, #tpu.memory_space<vmem>>, vector<1x21x128xbf16>
    %329 = vector.shape_cast %328 : vector<1x21x128xbf16> to vector<21x128xbf16>
    %330 = arith.extf %329 : vector<21x128xbf16> to vector<21x128xf32>
    %331 = vector.extract_strided_slice %330 {offsets = [0, 0], sizes = [17, 128], strides = [1, 1]} : vector<21x128xf32> to vector<17x128xf32>
    %c10 = arith.constant 10 : index
    %332 = memref.load %arg1[%c10] : memref<160xf32, #tpu.memory_space<smem>>
    %333 = vector.broadcast %332 : f32 to vector<17x128xf32>
    %334 = arith.mulf %333, %331 : vector<17x128xf32>
    %335 = arith.addf %299, %334 : vector<17x128xf32>
    %c30 = arith.constant 30 : index
    %336 = memref.load %arg1[%c30] : memref<160xf32, #tpu.memory_space<smem>>
    %337 = vector.broadcast %336 : f32 to vector<17x128xf32>
    %338 = arith.mulf %337, %331 : vector<17x128xf32>
    %339 = arith.addf %303, %338 : vector<17x128xf32>
    %c50 = arith.constant 50 : index
    %340 = memref.load %arg1[%c50] : memref<160xf32, #tpu.memory_space<smem>>
    %341 = vector.broadcast %340 : f32 to vector<17x128xf32>
    %342 = arith.mulf %341, %331 : vector<17x128xf32>
    %343 = arith.addf %307, %342 : vector<17x128xf32>
    %c70 = arith.constant 70 : index
    %344 = memref.load %arg1[%c70] : memref<160xf32, #tpu.memory_space<smem>>
    %345 = vector.broadcast %344 : f32 to vector<17x128xf32>
    %346 = arith.mulf %345, %331 : vector<17x128xf32>
    %347 = arith.addf %311, %346 : vector<17x128xf32>
    %c90 = arith.constant 90 : index
    %348 = memref.load %arg1[%c90] : memref<160xf32, #tpu.memory_space<smem>>
    %349 = vector.broadcast %348 : f32 to vector<17x128xf32>
    %350 = arith.mulf %349, %331 : vector<17x128xf32>
    %351 = arith.addf %315, %350 : vector<17x128xf32>
    %c110 = arith.constant 110 : index
    %352 = memref.load %arg1[%c110] : memref<160xf32, #tpu.memory_space<smem>>
    %353 = vector.broadcast %352 : f32 to vector<17x128xf32>
    %354 = arith.mulf %353, %331 : vector<17x128xf32>
    %355 = arith.addf %319, %354 : vector<17x128xf32>
    %c130 = arith.constant 130 : index
    %356 = memref.load %arg1[%c130] : memref<160xf32, #tpu.memory_space<smem>>
    %357 = vector.broadcast %356 : f32 to vector<17x128xf32>
    %358 = arith.mulf %357, %331 : vector<17x128xf32>
    %359 = arith.addf %323, %358 : vector<17x128xf32>
    %c150 = arith.constant 150 : index
    %360 = memref.load %arg1[%c150] : memref<160xf32, #tpu.memory_space<smem>>
    %361 = vector.broadcast %360 : f32 to vector<17x128xf32>
    %362 = arith.mulf %361, %331 : vector<17x128xf32>
    %363 = arith.addf %327, %362 : vector<17x128xf32>
    %364 = vector.extract_strided_slice %330 {offsets = [1, 0], sizes = [17, 128], strides = [1, 1]} : vector<21x128xf32> to vector<17x128xf32>
    %c11 = arith.constant 11 : index
    %365 = memref.load %arg1[%c11] : memref<160xf32, #tpu.memory_space<smem>>
    %366 = vector.broadcast %365 : f32 to vector<17x128xf32>
    %367 = arith.mulf %366, %364 : vector<17x128xf32>
    %368 = arith.addf %335, %367 : vector<17x128xf32>
    %c31 = arith.constant 31 : index
    %369 = memref.load %arg1[%c31] : memref<160xf32, #tpu.memory_space<smem>>
    %370 = vector.broadcast %369 : f32 to vector<17x128xf32>
    %371 = arith.mulf %370, %364 : vector<17x128xf32>
    %372 = arith.addf %339, %371 : vector<17x128xf32>
    %c51 = arith.constant 51 : index
    %373 = memref.load %arg1[%c51] : memref<160xf32, #tpu.memory_space<smem>>
    %374 = vector.broadcast %373 : f32 to vector<17x128xf32>
    %375 = arith.mulf %374, %364 : vector<17x128xf32>
    %376 = arith.addf %343, %375 : vector<17x128xf32>
    %c71 = arith.constant 71 : index
    %377 = memref.load %arg1[%c71] : memref<160xf32, #tpu.memory_space<smem>>
    %378 = vector.broadcast %377 : f32 to vector<17x128xf32>
    %379 = arith.mulf %378, %364 : vector<17x128xf32>
    %380 = arith.addf %347, %379 : vector<17x128xf32>
    %c91 = arith.constant 91 : index
    %381 = memref.load %arg1[%c91] : memref<160xf32, #tpu.memory_space<smem>>
    %382 = vector.broadcast %381 : f32 to vector<17x128xf32>
    %383 = arith.mulf %382, %364 : vector<17x128xf32>
    %384 = arith.addf %351, %383 : vector<17x128xf32>
    %c111 = arith.constant 111 : index
    %385 = memref.load %arg1[%c111] : memref<160xf32, #tpu.memory_space<smem>>
    %386 = vector.broadcast %385 : f32 to vector<17x128xf32>
    %387 = arith.mulf %386, %364 : vector<17x128xf32>
    %388 = arith.addf %355, %387 : vector<17x128xf32>
    %c131 = arith.constant 131 : index
    %389 = memref.load %arg1[%c131] : memref<160xf32, #tpu.memory_space<smem>>
    %390 = vector.broadcast %389 : f32 to vector<17x128xf32>
    %391 = arith.mulf %390, %364 : vector<17x128xf32>
    %392 = arith.addf %359, %391 : vector<17x128xf32>
    %c151 = arith.constant 151 : index
    %393 = memref.load %arg1[%c151] : memref<160xf32, #tpu.memory_space<smem>>
    %394 = vector.broadcast %393 : f32 to vector<17x128xf32>
    %395 = arith.mulf %394, %364 : vector<17x128xf32>
    %396 = arith.addf %363, %395 : vector<17x128xf32>
    %397 = vector.extract_strided_slice %330 {offsets = [2, 0], sizes = [17, 128], strides = [1, 1]} : vector<21x128xf32> to vector<17x128xf32>
    %c12 = arith.constant 12 : index
    %398 = memref.load %arg1[%c12] : memref<160xf32, #tpu.memory_space<smem>>
    %399 = vector.broadcast %398 : f32 to vector<17x128xf32>
    %400 = arith.mulf %399, %397 : vector<17x128xf32>
    %401 = arith.addf %368, %400 : vector<17x128xf32>
    %c32 = arith.constant 32 : index
    %402 = memref.load %arg1[%c32] : memref<160xf32, #tpu.memory_space<smem>>
    %403 = vector.broadcast %402 : f32 to vector<17x128xf32>
    %404 = arith.mulf %403, %397 : vector<17x128xf32>
    %405 = arith.addf %372, %404 : vector<17x128xf32>
    %c52 = arith.constant 52 : index
    %406 = memref.load %arg1[%c52] : memref<160xf32, #tpu.memory_space<smem>>
    %407 = vector.broadcast %406 : f32 to vector<17x128xf32>
    %408 = arith.mulf %407, %397 : vector<17x128xf32>
    %409 = arith.addf %376, %408 : vector<17x128xf32>
    %c72 = arith.constant 72 : index
    %410 = memref.load %arg1[%c72] : memref<160xf32, #tpu.memory_space<smem>>
    %411 = vector.broadcast %410 : f32 to vector<17x128xf32>
    %412 = arith.mulf %411, %397 : vector<17x128xf32>
    %413 = arith.addf %380, %412 : vector<17x128xf32>
    %c92 = arith.constant 92 : index
    %414 = memref.load %arg1[%c92] : memref<160xf32, #tpu.memory_space<smem>>
    %415 = vector.broadcast %414 : f32 to vector<17x128xf32>
    %416 = arith.mulf %415, %397 : vector<17x128xf32>
    %417 = arith.addf %384, %416 : vector<17x128xf32>
    %c112 = arith.constant 112 : index
    %418 = memref.load %arg1[%c112] : memref<160xf32, #tpu.memory_space<smem>>
    %419 = vector.broadcast %418 : f32 to vector<17x128xf32>
    %420 = arith.mulf %419, %397 : vector<17x128xf32>
    %421 = arith.addf %388, %420 : vector<17x128xf32>
    %c132 = arith.constant 132 : index
    %422 = memref.load %arg1[%c132] : memref<160xf32, #tpu.memory_space<smem>>
    %423 = vector.broadcast %422 : f32 to vector<17x128xf32>
    %424 = arith.mulf %423, %397 : vector<17x128xf32>
    %425 = arith.addf %392, %424 : vector<17x128xf32>
    %c152 = arith.constant 152 : index
    %426 = memref.load %arg1[%c152] : memref<160xf32, #tpu.memory_space<smem>>
    %427 = vector.broadcast %426 : f32 to vector<17x128xf32>
    %428 = arith.mulf %427, %397 : vector<17x128xf32>
    %429 = arith.addf %396, %428 : vector<17x128xf32>
    %430 = vector.extract_strided_slice %330 {offsets = [3, 0], sizes = [17, 128], strides = [1, 1]} : vector<21x128xf32> to vector<17x128xf32>
    %c13 = arith.constant 13 : index
    %431 = memref.load %arg1[%c13] : memref<160xf32, #tpu.memory_space<smem>>
    %432 = vector.broadcast %431 : f32 to vector<17x128xf32>
    %433 = arith.mulf %432, %430 : vector<17x128xf32>
    %434 = arith.addf %401, %433 : vector<17x128xf32>
    %c33 = arith.constant 33 : index
    %435 = memref.load %arg1[%c33] : memref<160xf32, #tpu.memory_space<smem>>
    %436 = vector.broadcast %435 : f32 to vector<17x128xf32>
    %437 = arith.mulf %436, %430 : vector<17x128xf32>
    %438 = arith.addf %405, %437 : vector<17x128xf32>
    %c53 = arith.constant 53 : index
    %439 = memref.load %arg1[%c53] : memref<160xf32, #tpu.memory_space<smem>>
    %440 = vector.broadcast %439 : f32 to vector<17x128xf32>
    %441 = arith.mulf %440, %430 : vector<17x128xf32>
    %442 = arith.addf %409, %441 : vector<17x128xf32>
    %c73 = arith.constant 73 : index
    %443 = memref.load %arg1[%c73] : memref<160xf32, #tpu.memory_space<smem>>
    %444 = vector.broadcast %443 : f32 to vector<17x128xf32>
    %445 = arith.mulf %444, %430 : vector<17x128xf32>
    %446 = arith.addf %413, %445 : vector<17x128xf32>
    %c93 = arith.constant 93 : index
    %447 = memref.load %arg1[%c93] : memref<160xf32, #tpu.memory_space<smem>>
    %448 = vector.broadcast %447 : f32 to vector<17x128xf32>
    %449 = arith.mulf %448, %430 : vector<17x128xf32>
    %450 = arith.addf %417, %449 : vector<17x128xf32>
    %c113 = arith.constant 113 : index
    %451 = memref.load %arg1[%c113] : memref<160xf32, #tpu.memory_space<smem>>
    %452 = vector.broadcast %451 : f32 to vector<17x128xf32>
    %453 = arith.mulf %452, %430 : vector<17x128xf32>
    %454 = arith.addf %421, %453 : vector<17x128xf32>
    %c133 = arith.constant 133 : index
    %455 = memref.load %arg1[%c133] : memref<160xf32, #tpu.memory_space<smem>>
    %456 = vector.broadcast %455 : f32 to vector<17x128xf32>
    %457 = arith.mulf %456, %430 : vector<17x128xf32>
    %458 = arith.addf %425, %457 : vector<17x128xf32>
    %c153 = arith.constant 153 : index
    %459 = memref.load %arg1[%c153] : memref<160xf32, #tpu.memory_space<smem>>
    %460 = vector.broadcast %459 : f32 to vector<17x128xf32>
    %461 = arith.mulf %460, %430 : vector<17x128xf32>
    %462 = arith.addf %429, %461 : vector<17x128xf32>
    %463 = vector.extract_strided_slice %330 {offsets = [4, 0], sizes = [17, 128], strides = [1, 1]} : vector<21x128xf32> to vector<17x128xf32>
    %c14 = arith.constant 14 : index
    %464 = memref.load %arg1[%c14] : memref<160xf32, #tpu.memory_space<smem>>
    %465 = vector.broadcast %464 : f32 to vector<17x128xf32>
    %466 = arith.mulf %465, %463 : vector<17x128xf32>
    %467 = arith.addf %434, %466 : vector<17x128xf32>
    %c34 = arith.constant 34 : index
    %468 = memref.load %arg1[%c34] : memref<160xf32, #tpu.memory_space<smem>>
    %469 = vector.broadcast %468 : f32 to vector<17x128xf32>
    %470 = arith.mulf %469, %463 : vector<17x128xf32>
    %471 = arith.addf %438, %470 : vector<17x128xf32>
    %c54 = arith.constant 54 : index
    %472 = memref.load %arg1[%c54] : memref<160xf32, #tpu.memory_space<smem>>
    %473 = vector.broadcast %472 : f32 to vector<17x128xf32>
    %474 = arith.mulf %473, %463 : vector<17x128xf32>
    %475 = arith.addf %442, %474 : vector<17x128xf32>
    %c74 = arith.constant 74 : index
    %476 = memref.load %arg1[%c74] : memref<160xf32, #tpu.memory_space<smem>>
    %477 = vector.broadcast %476 : f32 to vector<17x128xf32>
    %478 = arith.mulf %477, %463 : vector<17x128xf32>
    %479 = arith.addf %446, %478 : vector<17x128xf32>
    %c94 = arith.constant 94 : index
    %480 = memref.load %arg1[%c94] : memref<160xf32, #tpu.memory_space<smem>>
    %481 = vector.broadcast %480 : f32 to vector<17x128xf32>
    %482 = arith.mulf %481, %463 : vector<17x128xf32>
    %483 = arith.addf %450, %482 : vector<17x128xf32>
    %c114 = arith.constant 114 : index
    %484 = memref.load %arg1[%c114] : memref<160xf32, #tpu.memory_space<smem>>
    %485 = vector.broadcast %484 : f32 to vector<17x128xf32>
    %486 = arith.mulf %485, %463 : vector<17x128xf32>
    %487 = arith.addf %454, %486 : vector<17x128xf32>
    %c134 = arith.constant 134 : index
    %488 = memref.load %arg1[%c134] : memref<160xf32, #tpu.memory_space<smem>>
    %489 = vector.broadcast %488 : f32 to vector<17x128xf32>
    %490 = arith.mulf %489, %463 : vector<17x128xf32>
    %491 = arith.addf %458, %490 : vector<17x128xf32>
    %c154 = arith.constant 154 : index
    %492 = memref.load %arg1[%c154] : memref<160xf32, #tpu.memory_space<smem>>
    %493 = vector.broadcast %492 : f32 to vector<17x128xf32>
    %494 = arith.mulf %493, %463 : vector<17x128xf32>
    %495 = arith.addf %462, %494 : vector<17x128xf32>
    %c3_9 = arith.constant 3 : index
    %c0_10 = arith.constant 0 : index
    %c0_11 = arith.constant 0 : index
    %496 = vector.load %arg3[%c3_9, %c0_10, %c0_11] : memref<4x21x128xbf16, #tpu.memory_space<vmem>>, vector<1x21x128xbf16>
    %497 = vector.shape_cast %496 : vector<1x21x128xbf16> to vector<21x128xbf16>
    %498 = arith.extf %497 : vector<21x128xbf16> to vector<21x128xf32>
    %499 = vector.extract_strided_slice %498 {offsets = [0, 0], sizes = [17, 128], strides = [1, 1]} : vector<21x128xf32> to vector<17x128xf32>
    %c15 = arith.constant 15 : index
    %500 = memref.load %arg1[%c15] : memref<160xf32, #tpu.memory_space<smem>>
    %501 = vector.broadcast %500 : f32 to vector<17x128xf32>
    %502 = arith.mulf %501, %499 : vector<17x128xf32>
    %503 = arith.addf %467, %502 : vector<17x128xf32>
    %c35 = arith.constant 35 : index
    %504 = memref.load %arg1[%c35] : memref<160xf32, #tpu.memory_space<smem>>
    %505 = vector.broadcast %504 : f32 to vector<17x128xf32>
    %506 = arith.mulf %505, %499 : vector<17x128xf32>
    %507 = arith.addf %471, %506 : vector<17x128xf32>
    %c55 = arith.constant 55 : index
    %508 = memref.load %arg1[%c55] : memref<160xf32, #tpu.memory_space<smem>>
    %509 = vector.broadcast %508 : f32 to vector<17x128xf32>
    %510 = arith.mulf %509, %499 : vector<17x128xf32>
    %511 = arith.addf %475, %510 : vector<17x128xf32>
    %c75 = arith.constant 75 : index
    %512 = memref.load %arg1[%c75] : memref<160xf32, #tpu.memory_space<smem>>
    %513 = vector.broadcast %512 : f32 to vector<17x128xf32>
    %514 = arith.mulf %513, %499 : vector<17x128xf32>
    %515 = arith.addf %479, %514 : vector<17x128xf32>
    %c95 = arith.constant 95 : index
    %516 = memref.load %arg1[%c95] : memref<160xf32, #tpu.memory_space<smem>>
    %517 = vector.broadcast %516 : f32 to vector<17x128xf32>
    %518 = arith.mulf %517, %499 : vector<17x128xf32>
    %519 = arith.addf %483, %518 : vector<17x128xf32>
    %c115 = arith.constant 115 : index
    %520 = memref.load %arg1[%c115] : memref<160xf32, #tpu.memory_space<smem>>
    %521 = vector.broadcast %520 : f32 to vector<17x128xf32>
    %522 = arith.mulf %521, %499 : vector<17x128xf32>
    %523 = arith.addf %487, %522 : vector<17x128xf32>
    %c135 = arith.constant 135 : index
    %524 = memref.load %arg1[%c135] : memref<160xf32, #tpu.memory_space<smem>>
    %525 = vector.broadcast %524 : f32 to vector<17x128xf32>
    %526 = arith.mulf %525, %499 : vector<17x128xf32>
    %527 = arith.addf %491, %526 : vector<17x128xf32>
    %c155 = arith.constant 155 : index
    %528 = memref.load %arg1[%c155] : memref<160xf32, #tpu.memory_space<smem>>
    %529 = vector.broadcast %528 : f32 to vector<17x128xf32>
    %530 = arith.mulf %529, %499 : vector<17x128xf32>
    %531 = arith.addf %495, %530 : vector<17x128xf32>
    %532 = vector.extract_strided_slice %498 {offsets = [1, 0], sizes = [17, 128], strides = [1, 1]} : vector<21x128xf32> to vector<17x128xf32>
    %c16 = arith.constant 16 : index
    %533 = memref.load %arg1[%c16] : memref<160xf32, #tpu.memory_space<smem>>
    %534 = vector.broadcast %533 : f32 to vector<17x128xf32>
    %535 = arith.mulf %534, %532 : vector<17x128xf32>
    %536 = arith.addf %503, %535 : vector<17x128xf32>
    %c36 = arith.constant 36 : index
    %537 = memref.load %arg1[%c36] : memref<160xf32, #tpu.memory_space<smem>>
    %538 = vector.broadcast %537 : f32 to vector<17x128xf32>
    %539 = arith.mulf %538, %532 : vector<17x128xf32>
    %540 = arith.addf %507, %539 : vector<17x128xf32>
    %c56 = arith.constant 56 : index
    %541 = memref.load %arg1[%c56] : memref<160xf32, #tpu.memory_space<smem>>
    %542 = vector.broadcast %541 : f32 to vector<17x128xf32>
    %543 = arith.mulf %542, %532 : vector<17x128xf32>
    %544 = arith.addf %511, %543 : vector<17x128xf32>
    %c76 = arith.constant 76 : index
    %545 = memref.load %arg1[%c76] : memref<160xf32, #tpu.memory_space<smem>>
    %546 = vector.broadcast %545 : f32 to vector<17x128xf32>
    %547 = arith.mulf %546, %532 : vector<17x128xf32>
    %548 = arith.addf %515, %547 : vector<17x128xf32>
    %c96 = arith.constant 96 : index
    %549 = memref.load %arg1[%c96] : memref<160xf32, #tpu.memory_space<smem>>
    %550 = vector.broadcast %549 : f32 to vector<17x128xf32>
    %551 = arith.mulf %550, %532 : vector<17x128xf32>
    %552 = arith.addf %519, %551 : vector<17x128xf32>
    %c116 = arith.constant 116 : index
    %553 = memref.load %arg1[%c116] : memref<160xf32, #tpu.memory_space<smem>>
    %554 = vector.broadcast %553 : f32 to vector<17x128xf32>
    %555 = arith.mulf %554, %532 : vector<17x128xf32>
    %556 = arith.addf %523, %555 : vector<17x128xf32>
    %c136 = arith.constant 136 : index
    %557 = memref.load %arg1[%c136] : memref<160xf32, #tpu.memory_space<smem>>
    %558 = vector.broadcast %557 : f32 to vector<17x128xf32>
    %559 = arith.mulf %558, %532 : vector<17x128xf32>
    %560 = arith.addf %527, %559 : vector<17x128xf32>
    %c156 = arith.constant 156 : index
    %561 = memref.load %arg1[%c156] : memref<160xf32, #tpu.memory_space<smem>>
    %562 = vector.broadcast %561 : f32 to vector<17x128xf32>
    %563 = arith.mulf %562, %532 : vector<17x128xf32>
    %564 = arith.addf %531, %563 : vector<17x128xf32>
    %565 = vector.extract_strided_slice %498 {offsets = [2, 0], sizes = [17, 128], strides = [1, 1]} : vector<21x128xf32> to vector<17x128xf32>
    %c17 = arith.constant 17 : index
    %566 = memref.load %arg1[%c17] : memref<160xf32, #tpu.memory_space<smem>>
    %567 = vector.broadcast %566 : f32 to vector<17x128xf32>
    %568 = arith.mulf %567, %565 : vector<17x128xf32>
    %569 = arith.addf %536, %568 : vector<17x128xf32>
    %c37 = arith.constant 37 : index
    %570 = memref.load %arg1[%c37] : memref<160xf32, #tpu.memory_space<smem>>
    %571 = vector.broadcast %570 : f32 to vector<17x128xf32>
    %572 = arith.mulf %571, %565 : vector<17x128xf32>
    %573 = arith.addf %540, %572 : vector<17x128xf32>
    %c57 = arith.constant 57 : index
    %574 = memref.load %arg1[%c57] : memref<160xf32, #tpu.memory_space<smem>>
    %575 = vector.broadcast %574 : f32 to vector<17x128xf32>
    %576 = arith.mulf %575, %565 : vector<17x128xf32>
    %577 = arith.addf %544, %576 : vector<17x128xf32>
    %c77 = arith.constant 77 : index
    %578 = memref.load %arg1[%c77] : memref<160xf32, #tpu.memory_space<smem>>
    %579 = vector.broadcast %578 : f32 to vector<17x128xf32>
    %580 = arith.mulf %579, %565 : vector<17x128xf32>
    %581 = arith.addf %548, %580 : vector<17x128xf32>
    %c97 = arith.constant 97 : index
    %582 = memref.load %arg1[%c97] : memref<160xf32, #tpu.memory_space<smem>>
    %583 = vector.broadcast %582 : f32 to vector<17x128xf32>
    %584 = arith.mulf %583, %565 : vector<17x128xf32>
    %585 = arith.addf %552, %584 : vector<17x128xf32>
    %c117 = arith.constant 117 : index
    %586 = memref.load %arg1[%c117] : memref<160xf32, #tpu.memory_space<smem>>
    %587 = vector.broadcast %586 : f32 to vector<17x128xf32>
    %588 = arith.mulf %587, %565 : vector<17x128xf32>
    %589 = arith.addf %556, %588 : vector<17x128xf32>
    %c137 = arith.constant 137 : index
    %590 = memref.load %arg1[%c137] : memref<160xf32, #tpu.memory_space<smem>>
    %591 = vector.broadcast %590 : f32 to vector<17x128xf32>
    %592 = arith.mulf %591, %565 : vector<17x128xf32>
    %593 = arith.addf %560, %592 : vector<17x128xf32>
    %c157 = arith.constant 157 : index
    %594 = memref.load %arg1[%c157] : memref<160xf32, #tpu.memory_space<smem>>
    %595 = vector.broadcast %594 : f32 to vector<17x128xf32>
    %596 = arith.mulf %595, %565 : vector<17x128xf32>
    %597 = arith.addf %564, %596 : vector<17x128xf32>
    %598 = vector.extract_strided_slice %498 {offsets = [3, 0], sizes = [17, 128], strides = [1, 1]} : vector<21x128xf32> to vector<17x128xf32>
    %c18 = arith.constant 18 : index
    %599 = memref.load %arg1[%c18] : memref<160xf32, #tpu.memory_space<smem>>
    %600 = vector.broadcast %599 : f32 to vector<17x128xf32>
    %601 = arith.mulf %600, %598 : vector<17x128xf32>
    %602 = arith.addf %569, %601 : vector<17x128xf32>
    %c38 = arith.constant 38 : index
    %603 = memref.load %arg1[%c38] : memref<160xf32, #tpu.memory_space<smem>>
    %604 = vector.broadcast %603 : f32 to vector<17x128xf32>
    %605 = arith.mulf %604, %598 : vector<17x128xf32>
    %606 = arith.addf %573, %605 : vector<17x128xf32>
    %c58 = arith.constant 58 : index
    %607 = memref.load %arg1[%c58] : memref<160xf32, #tpu.memory_space<smem>>
    %608 = vector.broadcast %607 : f32 to vector<17x128xf32>
    %609 = arith.mulf %608, %598 : vector<17x128xf32>
    %610 = arith.addf %577, %609 : vector<17x128xf32>
    %c78 = arith.constant 78 : index
    %611 = memref.load %arg1[%c78] : memref<160xf32, #tpu.memory_space<smem>>
    %612 = vector.broadcast %611 : f32 to vector<17x128xf32>
    %613 = arith.mulf %612, %598 : vector<17x128xf32>
    %614 = arith.addf %581, %613 : vector<17x128xf32>
    %c98 = arith.constant 98 : index
    %615 = memref.load %arg1[%c98] : memref<160xf32, #tpu.memory_space<smem>>
    %616 = vector.broadcast %615 : f32 to vector<17x128xf32>
    %617 = arith.mulf %616, %598 : vector<17x128xf32>
    %618 = arith.addf %585, %617 : vector<17x128xf32>
    %c118 = arith.constant 118 : index
    %619 = memref.load %arg1[%c118] : memref<160xf32, #tpu.memory_space<smem>>
    %620 = vector.broadcast %619 : f32 to vector<17x128xf32>
    %621 = arith.mulf %620, %598 : vector<17x128xf32>
    %622 = arith.addf %589, %621 : vector<17x128xf32>
    %c138 = arith.constant 138 : index
    %623 = memref.load %arg1[%c138] : memref<160xf32, #tpu.memory_space<smem>>
    %624 = vector.broadcast %623 : f32 to vector<17x128xf32>
    %625 = arith.mulf %624, %598 : vector<17x128xf32>
    %626 = arith.addf %593, %625 : vector<17x128xf32>
    %c158 = arith.constant 158 : index
    %627 = memref.load %arg1[%c158] : memref<160xf32, #tpu.memory_space<smem>>
    %628 = vector.broadcast %627 : f32 to vector<17x128xf32>
    %629 = arith.mulf %628, %598 : vector<17x128xf32>
    %630 = arith.addf %597, %629 : vector<17x128xf32>
    %631 = vector.extract_strided_slice %498 {offsets = [4, 0], sizes = [17, 128], strides = [1, 1]} : vector<21x128xf32> to vector<17x128xf32>
    %c19 = arith.constant 19 : index
    %632 = memref.load %arg1[%c19] : memref<160xf32, #tpu.memory_space<smem>>
    %633 = vector.broadcast %632 : f32 to vector<17x128xf32>
    %634 = arith.mulf %633, %631 : vector<17x128xf32>
    %635 = arith.addf %602, %634 : vector<17x128xf32>
    %c39 = arith.constant 39 : index
    %636 = memref.load %arg1[%c39] : memref<160xf32, #tpu.memory_space<smem>>
    %637 = vector.broadcast %636 : f32 to vector<17x128xf32>
    %638 = arith.mulf %637, %631 : vector<17x128xf32>
    %639 = arith.addf %606, %638 : vector<17x128xf32>
    %c59 = arith.constant 59 : index
    %640 = memref.load %arg1[%c59] : memref<160xf32, #tpu.memory_space<smem>>
    %641 = vector.broadcast %640 : f32 to vector<17x128xf32>
    %642 = arith.mulf %641, %631 : vector<17x128xf32>
    %643 = arith.addf %610, %642 : vector<17x128xf32>
    %c79 = arith.constant 79 : index
    %644 = memref.load %arg1[%c79] : memref<160xf32, #tpu.memory_space<smem>>
    %645 = vector.broadcast %644 : f32 to vector<17x128xf32>
    %646 = arith.mulf %645, %631 : vector<17x128xf32>
    %647 = arith.addf %614, %646 : vector<17x128xf32>
    %c99 = arith.constant 99 : index
    %648 = memref.load %arg1[%c99] : memref<160xf32, #tpu.memory_space<smem>>
    %649 = vector.broadcast %648 : f32 to vector<17x128xf32>
    %650 = arith.mulf %649, %631 : vector<17x128xf32>
    %651 = arith.addf %618, %650 : vector<17x128xf32>
    %c119 = arith.constant 119 : index
    %652 = memref.load %arg1[%c119] : memref<160xf32, #tpu.memory_space<smem>>
    %653 = vector.broadcast %652 : f32 to vector<17x128xf32>
    %654 = arith.mulf %653, %631 : vector<17x128xf32>
    %655 = arith.addf %622, %654 : vector<17x128xf32>
    %c139 = arith.constant 139 : index
    %656 = memref.load %arg1[%c139] : memref<160xf32, #tpu.memory_space<smem>>
    %657 = vector.broadcast %656 : f32 to vector<17x128xf32>
    %658 = arith.mulf %657, %631 : vector<17x128xf32>
    %659 = arith.addf %626, %658 : vector<17x128xf32>
    %c159 = arith.constant 159 : index
    %660 = memref.load %arg1[%c159] : memref<160xf32, #tpu.memory_space<smem>>
    %661 = vector.broadcast %660 : f32 to vector<17x128xf32>
    %662 = arith.mulf %661, %631 : vector<17x128xf32>
    %663 = arith.addf %630, %662 : vector<17x128xf32>
    %cst = arith.constant dense<0xFF800000> : vector<128xf32>
    %664 = vector.multi_reduction <maximumf>, %635, %cst [0] : vector<17x128xf32> to vector<128xf32>
    %665 = vector.shape_cast %664 : vector<128xf32> to vector<1x128xf32>
    %cst_12 = arith.constant dense<0xFF800000> : vector<128xf32>
    %666 = vector.multi_reduction <maximumf>, %639, %cst_12 [0] : vector<17x128xf32> to vector<128xf32>
    %667 = vector.shape_cast %666 : vector<128xf32> to vector<1x128xf32>
    %cst_13 = arith.constant dense<0xFF800000> : vector<128xf32>
    %668 = vector.multi_reduction <maximumf>, %643, %cst_13 [0] : vector<17x128xf32> to vector<128xf32>
    %669 = vector.shape_cast %668 : vector<128xf32> to vector<1x128xf32>
    %cst_14 = arith.constant dense<0xFF800000> : vector<128xf32>
    %670 = vector.multi_reduction <maximumf>, %647, %cst_14 [0] : vector<17x128xf32> to vector<128xf32>
    %671 = vector.shape_cast %670 : vector<128xf32> to vector<1x128xf32>
    %cst_15 = arith.constant dense<0xFF800000> : vector<128xf32>
    %672 = vector.multi_reduction <maximumf>, %651, %cst_15 [0] : vector<17x128xf32> to vector<128xf32>
    %673 = vector.shape_cast %672 : vector<128xf32> to vector<1x128xf32>
    %cst_16 = arith.constant dense<0xFF800000> : vector<128xf32>
    %674 = vector.multi_reduction <maximumf>, %655, %cst_16 [0] : vector<17x128xf32> to vector<128xf32>
    %675 = vector.shape_cast %674 : vector<128xf32> to vector<1x128xf32>
    %cst_17 = arith.constant dense<0xFF800000> : vector<128xf32>
    %676 = vector.multi_reduction <maximumf>, %659, %cst_17 [0] : vector<17x128xf32> to vector<128xf32>
    %677 = vector.shape_cast %676 : vector<128xf32> to vector<1x128xf32>
    %cst_18 = arith.constant dense<0xFF800000> : vector<128xf32>
    %678 = vector.multi_reduction <maximumf>, %663, %cst_18 [0] : vector<17x128xf32> to vector<128xf32>
    %679 = vector.shape_cast %678 : vector<128xf32> to vector<1x128xf32>
    %680 = tpu.concatenate %665, %667, %669, %671, %673, %675, %677, %679 in 0 : vector<1x128xf32>, vector<1x128xf32>, vector<1x128xf32>, vector<1x128xf32>, vector<1x128xf32>, vector<1x128xf32>, vector<1x128xf32>, vector<1x128xf32> -> vector<8x128xf32>
    %c0_19 = arith.constant 0 : index
    %c0_20 = arith.constant 0 : index
    %681 = vector.load %arg2[%c0_19, %c0_20] : memref<8x1xf32, #tpu.memory_space<vmem>>, vector<8x1xf32>
    %682 = vector.broadcast %681 : vector<8x1xf32> to vector<8x128xf32>
    %683 = arith.addf %680, %682 : vector<8x128xf32>
    %cst_21 = arith.constant 0.000000e+00 : f32
    %684 = vector.broadcast %cst_21 : f32 to vector<8x128xf32>
    %685 = arith.maximumf %683, %684 : vector<8x128xf32>
    %c0_22 = arith.constant 0 : index
    %c0_23 = arith.constant 0 : index
    %686 = vector.load %arg4[%c0_22, %c0_23] : memref<8x128xf32, #tpu.memory_space<vmem>>, vector<8x128xf32>
    tpu.vector_store %arg4[%c0_22, %c0_23], %685 {strides = array<i32>} : memref<8x128xf32, #tpu.memory_space<vmem>>, vector<8x128xf32>,
    return
  }
  func.func @transform_0(%arg0: i32, %arg1: memref<160xf32, #tpu.memory_space<smem>>) -> (i32, i32) {
    %c0_i32 = arith.constant 0 : i32
    %c0_i32_0 = arith.constant 0 : i32
    %c0_i32_1 = arith.constant 0 : i32
    return %c0_i32, %c0_i32_0 : i32, i32
  }
  func.func @transform_1(%arg0: i32, %arg1: memref<160xf32, #tpu.memory_space<smem>>) -> (i32, i32, i32) {
    %c0_i32 = arith.constant 0 : i32
    %c0_i32_0 = arith.constant 0 : i32
    %c0_i32_1 = arith.constant 0 : i32
    return %c0_i32, %c0_i32_0, %arg0 : i32, i32, i32
  }
  func.func @transform_2(%arg0: i32, %arg1: memref<160xf32, #tpu.memory_space<smem>>) -> (i32, i32) {
    %c0_i32 = arith.constant 0 : i32
    %c0_i32_0 = arith.constant 0 : i32
    return %c0_i32, %arg0 : i32, i32
  }
}

</mosaic_0001>

<llo_original>
// kernel: cnn_forward_clb.1
$region0: #{cnn_forward_clb.1}
  #allocation0 [shape = 'u32[]', space=smem, size = 0x4, offset = 0x4, fixed_abs, tag = 'smem constant byte address 0x4 - core index']
  #allocation1 [shape = 'u32[144,128]{1,0:T(1,128)}', space=vmem, size = 0x12000, scoped, tag = 'internal scratch']
  #allocation2 [shape = 's32[1]{0}', space=sflag, size = 0x4, scoped, tag = 'scoped memory for cnn_forward_clb.1']
  #allocation3 [shape = 'u8[1024]{0}', space=smem, size = 0x400, scoped, tag = 'prefetched SMEM operand 0']
  %s0 = inlined_call_operand.vmem [shape: f32[160], index: 0, kind: input, shape index: {}]
  %s1 = inlined_call_operand.vmem [shape: f32[8,1], index: 1, kind: input, shape index: {}]
  %s2 = inlined_call_operand.vmem [shape: bf16[4,21,128], index: 2, kind: input, shape index: {}]
  %s3 = inlined_call_operand.vmem [shape: f32[8,128], index: 3, kind: output, shape index: {}]
  %s4 = sld [smem:[#allocation0]]
  $region18: #{cnn_forward_clb.1} parent=0
    _
  %s6 = ssub.s32 1, %s4
  %s7 = scalar_select 0, %s6, %s4
  %s8 = sshll.u32 %s0, 4
  %s9 = int_to_ptr.vmem [resolvable:$true] %s8
  %11 = dma.vmem_to_smem %s9, 32, [#allocation3], [#allocation2]
  %12 = dma.done [#allocation2], 32
  %13 = sfence
  // Predicated region
  $region2: #{cnn_forward_clb.1} parent=0 // pred_check
    _
  $region3: #{cnn_forward_clb.1} parent=0 // pred_check_branch
    %15 = sbr.rel (0) target = $region5
  $region4: #{cnn_forward_clb.1} parent=0 // pred_region
    _
  $region5: #{cnn_forward_clb.1} parent=0 // pred_fallthru
    _
  // Predicated region
  $region6: #{cnn_forward_clb.1} parent=0 // pred_check
    _
  $region7: #{cnn_forward_clb.1} parent=0 // pred_check_branch
    %17 = sbr.rel (0) target = $region9
  $region8: #{cnn_forward_clb.1} parent=0 // pred_region
    _
  $region9: #{cnn_forward_clb.1} parent=0 // pred_fallthru
    _
  %v18 = vld [vmem:[%s2] sm:$0xf]
  %v19 = vld [vmem:[%s2 + $0x4] sm:$0xf]
  %v20 = vld [vmem:[%s2 + $0x8] sm:$0x7]
  %v21 = vunpack.c.l.bf16 %v18
  %v22 = vunpack.c.l.bf16 %v19
  %v23 = vunpack.c.l.bf16 %v20
  %s24 = sld [smem:[#allocation3]]
  %v25 = vstv %s24
  %v26 = vmul.f32 %v25, %v21
  %v27 = vmul.f32 %v25, %v22
  %v28 = vmul.f32 %v25, %v23
  %s29 = sld [smem:[#allocation3 + $0x14]]
  %v30 = vstv %s29
  %v31 = vmul.f32 %v30, %v21
  %v32 = vmul.f32 %v30, %v22
  %v33 = vmul.f32 %v30, %v23
  %s34 = sld [smem:[#allocation3 + $0x28]]
  %v35 = vstv %s34
  %v36 = vmul.f32 %v35, %v21
  %v37 = vmul.f32 %v35, %v22
  %v38 = vmul.f32 %v35, %v23
  %s39 = sld [smem:[#allocation3 + $0x3c]]
  %v40 = vstv %s39
  %v41 = vmul.f32 %v40, %v21
  %v42 = vmul.f32 %v40, %v22
  %v43 = vmul.f32 %v40, %v23
  %s44 = sld [smem:[#allocation3 + $0x50]]
  %v45 = vstv %s44
  %v46 = vmul.f32 %v45, %v21
  %v47 = vmul.f32 %v45, %v22
  %v48 = vmul.f32 %v45, %v23
  %s49 = sld [smem:[#allocation3 + $0x64]]
  %v50 = vstv %s49
  %v51 = vmul.f32 %v50, %v21
  %v52 = vmul.f32 %v50, %v22
  %v53 = vmul.f32 %v50, %v23
  %s54 = sld [smem:[#allocation3 + $0x78]]
  %v55 = vstv %s54
  %v56 = vmul.f32 %v55, %v21
  %v57 = vmul.f32 %v55, %v22
  %v58 = vmul.f32 %v55, %v23
  %s59 = sld [smem:[#allocation3 + $0x8c]]
  %v60 = vstv %s59
  %v61 = vmul.f32 %v60, %v21
  %v62 = vmul.f32 %v60, %v22
  %v63 = vmul.f32 %v60, %v23
  %s64 = sld [smem:[#allocation3 + $0x1]]
  %v65 = vstv %s64
  %v66 = vmul.f32 %v65, %v21
  %v67 = vmul.f32 %v65, %v22
  %v68 = vmul.f32 %v65, %v23
  %vm72 = vcmask 1046528
  %v73 = vrot.slane %v66, 1
  %v74 = vrot.slane %v67, 1
  %v75 = vsel %vm72, %v73, %v74
  %v76 = vrot.slane %v68, 1
  %v77 = vsel %vm72, %v74, %v76
  %v81 = vadd.f32 %v26, %v75
  %v82 = vadd.f32 %v27, %v77
  %v83 = vadd.f32 %v28, %v76
  %s84 = sld [smem:[#allocation3 + $0x15]]
  %v85 = vstv %s84
  %v86 = vmul.f32 %v85, %v21
  %v87 = vmul.f32 %v85, %v22
  %v88 = vmul.f32 %v85, %v23
  %v92 = vrot.slane %v86, 1
  %v93 = vrot.slane %v87, 1
  %v94 = vsel %vm72, %v92, %v93
  %v95 = vrot.slane %v88, 1
  %v96 = vsel %vm72, %v93, %v95
  %v100 = vadd.f32 %v31, %v94
  %v101 = vadd.f32 %v32, %v96
  %v102 = vadd.f32 %v33, %v95
  %s103 = sld [smem:[#allocation3 + $0x29]]
  %v104 = vstv %s103
  %v105 = vmul.f32 %v104, %v21
  %v106 = vmul.f32 %v104, %v22
  %v107 = vmul.f32 %v104, %v23
  %v111 = vrot.slane %v105, 1
  %v112 = vrot.slane %v106, 1
  %v113 = vsel %vm72, %v111, %v112
  %v114 = vrot.slane %v107, 1
  %v115 = vsel %vm72, %v112, %v114
  %v119 = vadd.f32 %v36, %v113
  %v120 = vadd.f32 %v37, %v115
  %v121 = vadd.f32 %v38, %v114
  %s122 = sld [smem:[#allocation3 + $0x3d]]
  %v123 = vstv %s122
  %v124 = vmul.f32 %v123, %v21
  %v125 = vmul.f32 %v123, %v22
  %v126 = vmul.f32 %v123, %v23
  %v130 = vrot.slane %v124, 1
  %v131 = vrot.slane %v125, 1
  %v132 = vsel %vm72, %v130, %v131
  %v133 = vrot.slane %v126, 1
  %v134 = vsel %vm72, %v131, %v133
  %v138 = vadd.f32 %v41, %v132
  %v139 = vadd.f32 %v42, %v134
  %v140 = vadd.f32 %v43, %v133
  %s141 = sld [smem:[#allocation3 + $0x51]]
  %v142 = vstv %s141
  %v143 = vmul.f32 %v142, %v21
  %v144 = vmul.f32 %v142, %v22
  %v145 = vmul.f32 %v142, %v23
  %v149 = vrot.slane %v143, 1
  %v150 = vrot.slane %v144, 1
  %v151 = vsel %vm72, %v149, %v150
  %v152 = vrot.slane %v145, 1
  %v153 = vsel %vm72, %v150, %v152
  %v157 = vadd.f32 %v46, %v151
  %v158 = vadd.f32 %v47, %v153
  %v159 = vadd.f32 %v48, %v152
  %s160 = sld [smem:[#allocation3 + $0x65]]
  %v161 = vstv %s160
  %v162 = vmul.f32 %v161, %v21
  %v163 = vmul.f32 %v161, %v22
  %v164 = vmul.f32 %v161, %v23
  %v168 = vrot.slane %v162, 1
  %v169 = vrot.slane %v163, 1
  %v170 = vsel %vm72, %v168, %v169
  %v171 = vrot.slane %v164, 1
  %v172 = vsel %vm72, %v169, %v171
  %v176 = vadd.f32 %v51, %v170
  %v177 = vadd.f32 %v52, %v172
  %v178 = vadd.f32 %v53, %v171
  %s179 = sld [smem:[#allocation3 + $0x79]]
  %v180 = vstv %s179
  %v181 = vmul.f32 %v180, %v21
  %v182 = vmul.f32 %v180, %v22
  %v183 = vmul.f32 %v180, %v23
  %v187 = vrot.slane %v181, 1
  %v188 = vrot.slane %v182, 1
  %v189 = vsel %vm72, %v187, %v188
  %v190 = vrot.slane %v183, 1
  %v191 = vsel %vm72, %v188, %v190
  %v195 = vadd.f32 %v56, %v189
  %v196 = vadd.f32 %v57, %v191
  %v197 = vadd.f32 %v58, %v190
  %s198 = sld [smem:[#allocation3 + $0x8d]]
  %v199 = vstv %s198
  %v200 = vmul.f32 %v199, %v21
  %v201 = vmul.f32 %v199, %v22
  %v202 = vmul.f32 %v199, %v23
  %v206 = vrot.slane %v200, 1
  %v207 = vrot.slane %v201, 1
  %v208 = vsel %vm72, %v206, %v207
  %v209 = vrot.slane %v202, 1
  %v210 = vsel %vm72, %v207, %v209
  %v214 = vadd.f32 %v61, %v208
  %v215 = vadd.f32 %v62, %v210
  %v216 = vadd.f32 %v63, %v209
  %s217 = sld [smem:[#allocation3 + $0x2]]
  %v218 = vstv %s217
  %v219 = vmul.f32 %v218, %v21
  %v220 = vmul.f32 %v218, %v22
  %v221 = vmul.f32 %v218, %v23
  %vm225 = vcmask 1045504
  %v226 = vrot.slane %v219, 2
  %v227 = vrot.slane %v220, 2
  %v228 = vsel %vm225, %v226, %v227
  %v229 = vrot.slane %v221, 2
  %v230 = vsel %vm225, %v227, %v229
  %v234 = vadd.f32 %v81, %v228
  %v235 = vadd.f32 %v82, %v230
  %v236 = vadd.f32 %v83, %v229
  %s237 = sld [smem:[#allocation3 + $0x16]]
  %v238 = vstv %s237
  %v239 = vmul.f32 %v238, %v21
  %v240 = vmul.f32 %v238, %v22
  %v241 = vmul.f32 %v238, %v23
  %v245 = vrot.slane %v239, 2
  %v246 = vrot.slane %v240, 2
  %v247 = vsel %vm225, %v245, %v246
  %v248 = vrot.slane %v241, 2
  %v249 = vsel %vm225, %v246, %v248
  %v253 = vadd.f32 %v100, %v247
  %v254 = vadd.f32 %v101, %v249
  %v255 = vadd.f32 %v102, %v248
  %s256 = sld [smem:[#allocation3 + $0x2a]]
  %v257 = vstv %s256
  %v258 = vmul.f32 %v257, %v21
  %v259 = vmul.f32 %v257, %v22
  %v260 = vmul.f32 %v257, %v23
  %v264 = vrot.slane %v258, 2
  %v265 = vrot.slane %v259, 2
  %v266 = vsel %vm225, %v264, %v265
  %v267 = vrot.slane %v260, 2
  %v268 = vsel %vm225, %v265, %v267
  %v272 = vadd.f32 %v119, %v266
  %v273 = vadd.f32 %v120, %v268
  %v274 = vadd.f32 %v121, %v267
  %s275 = sld [smem:[#allocation3 + $0x3e]]
  %v276 = vstv %s275
  %v277 = vmul.f32 %v276, %v21
  %v278 = vmul.f32 %v276, %v22
  %v279 = vmul.f32 %v276, %v23
  %v283 = vrot.slane %v277, 2
  %v284 = vrot.slane %v278, 2
  %v285 = vsel %vm225, %v283, %v284
  %v286 = vrot.slane %v279, 2
  %v287 = vsel %vm225, %v284, %v286
  %v291 = vadd.f32 %v138, %v285
  %v292 = vadd.f32 %v139, %v287
  %v293 = vadd.f32 %v140, %v286
  %s294 = sld [smem:[#allocation3 + $0x52]]
  %v295 = vstv %s294
  %v296 = vmul.f32 %v295, %v21
  %v297 = vmul.f32 %v295, %v22
  %v298 = vmul.f32 %v295, %v23
  %v302 = vrot.slane %v296, 2
  %v303 = vrot.slane %v297, 2
  %v304 = vsel %vm225, %v302, %v303
  %v305 = vrot.slane %v298, 2
  %v306 = vsel %vm225, %v303, %v305
  %v310 = vadd.f32 %v157, %v304
  %v311 = vadd.f32 %v158, %v306
  %v312 = vadd.f32 %v159, %v305
  %s313 = sld [smem:[#allocation3 + $0x66]]
  %v314 = vstv %s313
  %v315 = vmul.f32 %v314, %v21
  %v316 = vmul.f32 %v314, %v22
  %v317 = vmul.f32 %v314, %v23
  %v321 = vrot.slane %v315, 2
  %v322 = vrot.slane %v316, 2
  %v323 = vsel %vm225, %v321, %v322
  %v324 = vrot.slane %v317, 2
  %v325 = vsel %vm225, %v322, %v324
  %v329 = vadd.f32 %v176, %v323
  %v330 = vadd.f32 %v177, %v325
  %v331 = vadd.f32 %v178, %v324
  %s332 = sld [smem:[#allocation3 + $0x7a]]
  %v333 = vstv %s332
  %v334 = vmul.f32 %v333, %v21
  %v335 = vmul.f32 %v333, %v22
  %v336 = vmul.f32 %v333, %v23
  %v340 = vrot.slane %v334, 2
  %v341 = vrot.slane %v335, 2
  %v342 = vsel %vm225, %v340, %v341
  %v343 = vrot.slane %v336, 2
  %v344 = vsel %vm225, %v341, %v343
  %v348 = vadd.f32 %v195, %v342
  %v349 = vadd.f32 %v196, %v344
  %v350 = vadd.f32 %v197, %v343
  %s351 = sld [smem:[#allocation3 + $0x8e]]
  %v352 = vstv %s351
  %v353 = vmul.f32 %v352, %v21
  %v354 = vmul.f32 %v352, %v22
  %v355 = vmul.f32 %v352, %v23
  %v359 = vrot.slane %v353, 2
  %v360 = vrot.slane %v354, 2
  %v361 = vsel %vm225, %v359, %v360
  %v362 = vrot.slane %v355, 2
  %v363 = vsel %vm225, %v360, %v362
  %v367 = vadd.f32 %v214, %v361
  %v368 = vadd.f32 %v215, %v363
  %v369 = vadd.f32 %v216, %v362
  %s370 = sld [smem:[#allocation3 + $0x3]]
  %v371 = vstv %s370
  %v372 = vmul.f32 %v371, %v21
  %v373 = vmul.f32 %v371, %v22
  %v374 = vmul.f32 %v371, %v23
  %vm378 = vcmask 1044480
  %v379 = vrot.slane %v372, 3
  %v380 = vrot.slane %v373, 3
  %v381 = vsel %vm378, %v379, %v380
  %v382 = vrot.slane %v374, 3
  %v383 = vsel %vm378, %v380, %v382
  %v387 = vadd.f32 %v234, %v381
  %v388 = vadd.f32 %v235, %v383
  %v389 = vadd.f32 %v236, %v382
  %s390 = sld [smem:[#allocation3 + $0x17]]
  %v391 = vstv %s390
  %v392 = vmul.f32 %v391, %v21
  %v393 = vmul.f32 %v391, %v22
  %v394 = vmul.f32 %v391, %v23
  %v398 = vrot.slane %v392, 3
  %v399 = vrot.slane %v393, 3
  %v400 = vsel %vm378, %v398, %v399
  %v401 = vrot.slane %v394, 3
  %v402 = vsel %vm378, %v399, %v401
  %v406 = vadd.f32 %v253, %v400
  %v407 = vadd.f32 %v254, %v402
  %v408 = vadd.f32 %v255, %v401
  %s409 = sld [smem:[#allocation3 + $0x2b]]
  %v410 = vstv %s409
  %v411 = vmul.f32 %v410, %v21
  %v412 = vmul.f32 %v410, %v22
  %v413 = vmul.f32 %v410, %v23
  %v417 = vrot.slane %v411, 3
  %v418 = vrot.slane %v412, 3
  %v419 = vsel %vm378, %v417, %v418
  %v420 = vrot.slane %v413, 3
  %v421 = vsel %vm378, %v418, %v420
  %v425 = vadd.f32 %v272, %v419
  %v426 = vadd.f32 %v273, %v421
  %v427 = vadd.f32 %v274, %v420
  %s428 = sld [smem:[#allocation3 + $0x3f]]
  %v429 = vstv %s428
  %v430 = vmul.f32 %v429, %v21
  %v431 = vmul.f32 %v429, %v22
  %v432 = vmul.f32 %v429, %v23
  %v436 = vrot.slane %v430, 3
  %v437 = vrot.slane %v431, 3
  %v438 = vsel %vm378, %v436, %v437
  %v439 = vrot.slane %v432, 3
  %v440 = vsel %vm378, %v437, %v439
  %v444 = vadd.f32 %v291, %v438
  %v445 = vadd.f32 %v292, %v440
  %v446 = vadd.f32 %v293, %v439
  %s447 = sld [smem:[#allocation3 + $0x53]]
  %v448 = vstv %s447
  %v449 = vmul.f32 %v448, %v21
  %v450 = vmul.f32 %v448, %v22
  %v451 = vmul.f32 %v448, %v23
  %v455 = vrot.slane %v449, 3
  %v456 = vrot.slane %v450, 3
  %v457 = vsel %vm378, %v455, %v456
  %v458 = vrot.slane %v451, 3
  %v459 = vsel %vm378, %v456, %v458
  %v463 = vadd.f32 %v310, %v457
  %v464 = vadd.f32 %v311, %v459
  %v465 = vadd.f32 %v312, %v458
  %s466 = sld [smem:[#allocation3 + $0x67]]
  %v467 = vstv %s466
  %v468 = vmul.f32 %v467, %v21
  %v469 = vmul.f32 %v467, %v22
  %v470 = vmul.f32 %v467, %v23
  %v474 = vrot.slane %v468, 3
  %v475 = vrot.slane %v469, 3
  %v476 = vsel %vm378, %v474, %v475
  %v477 = vrot.slane %v470, 3
  %v478 = vsel %vm378, %v475, %v477
  %v482 = vadd.f32 %v329, %v476
  %v483 = vadd.f32 %v330, %v478
  %v484 = vadd.f32 %v331, %v477
  %s485 = sld [smem:[#allocation3 + $0x7b]]
  %v486 = vstv %s485
  %v487 = vmul.f32 %v486, %v21
  %v488 = vmul.f32 %v486, %v22
  %v489 = vmul.f32 %v486, %v23
  %v493 = vrot.slane %v487, 3
  %v494 = vrot.slane %v488, 3
  %v495 = vsel %vm378, %v493, %v494
  %v496 = vrot.slane %v489, 3
  %v497 = vsel %vm378, %v494, %v496
  %v501 = vadd.f32 %v348, %v495
  %v502 = vadd.f32 %v349, %v497
  %v503 = vadd.f32 %v350, %v496
  %s504 = sld [smem:[#allocation3 + $0x8f]]
  %v505 = vstv %s504
  %v506 = vmul.f32 %v505, %v21
  %v507 = vmul.f32 %v505, %v22
  %v508 = vmul.f32 %v505, %v23
  %v512 = vrot.slane %v506, 3
  %v513 = vrot.slane %v507, 3
  %v514 = vsel %vm378, %v512, %v513
  %v515 = vrot.slane %v508, 3
  %v516 = vsel %vm378, %v513, %v515
  %v520 = vadd.f32 %v367, %v514
  %v521 = vadd.f32 %v368, %v516
  %v522 = vadd.f32 %v369, %v515
  %s523 = sld [smem:[#allocation3 + $0x4]]
  %v524 = vstv %s523
  %v525 = vmul.f32 %v524, %v21
  %v526 = vmul.f32 %v524, %v22
  %v527 = vmul.f32 %v524, %v23
  %vm531 = vcmask 1043456
  %v532 = vrot.slane %v525, 4
  %v533 = vrot.slane %v526, 4
  %v534 = vsel %vm531, %v532, %v533
  %v535 = vrot.slane %v527, 4
  %v536 = vsel %vm531, %v533, %v535
  %v540 = vadd.f32 %v387, %v534
  %v541 = vadd.f32 %v388, %v536
  %v542 = vadd.f32 %v389, %v535
  %s543 = sld [smem:[#allocation3 + $0x18]]
  %v544 = vstv %s543
  %v545 = vmul.f32 %v544, %v21
  %v546 = vmul.f32 %v544, %v22
  %v547 = vmul.f32 %v544, %v23
  %v551 = vrot.slane %v545, 4
  %v552 = vrot.slane %v546, 4
  %v553 = vsel %vm531, %v551, %v552
  %v554 = vrot.slane %v547, 4
  %v555 = vsel %vm531, %v552, %v554
  %v559 = vadd.f32 %v406, %v553
  %v560 = vadd.f32 %v407, %v555
  %v561 = vadd.f32 %v408, %v554
  %s562 = sld [smem:[#allocation3 + $0x2c]]
  %v563 = vstv %s562
  %v564 = vmul.f32 %v563, %v21
  %v565 = vmul.f32 %v563, %v22
  %v566 = vmul.f32 %v563, %v23
  %v570 = vrot.slane %v564, 4
  %v571 = vrot.slane %v565, 4
  %v572 = vsel %vm531, %v570, %v571
  %v573 = vrot.slane %v566, 4
  %v574 = vsel %vm531, %v571, %v573
  %v578 = vadd.f32 %v425, %v572
  %v579 = vadd.f32 %v426, %v574
  %v580 = vadd.f32 %v427, %v573
  %s581 = sld [smem:[#allocation3 + $0x40]]
  %v582 = vstv %s581
  %v583 = vmul.f32 %v582, %v21
  %v584 = vmul.f32 %v582, %v22
  %v585 = vmul.f32 %v582, %v23
  %v589 = vrot.slane %v583, 4
  %v590 = vrot.slane %v584, 4
  %v591 = vsel %vm531, %v589, %v590
  %v592 = vrot.slane %v585, 4
  %v593 = vsel %vm531, %v590, %v592
  %v597 = vadd.f32 %v444, %v591
  %v598 = vadd.f32 %v445, %v593
  %v599 = vadd.f32 %v446, %v592
  %s600 = sld [smem:[#allocation3 + $0x54]]
  %v601 = vstv %s600
  %v602 = vmul.f32 %v601, %v21
  %v603 = vmul.f32 %v601, %v22
  %v604 = vmul.f32 %v601, %v23
  %v608 = vrot.slane %v602, 4
  %v609 = vrot.slane %v603, 4
  %v610 = vsel %vm531, %v608, %v609
  %v611 = vrot.slane %v604, 4
  %v612 = vsel %vm531, %v609, %v611
  %v616 = vadd.f32 %v463, %v610
  %v617 = vadd.f32 %v464, %v612
  %v618 = vadd.f32 %v465, %v611
  %s619 = sld [smem:[#allocation3 + $0x68]]
  %v620 = vstv %s619
  %v621 = vmul.f32 %v620, %v21
  %v622 = vmul.f32 %v620, %v22
  %v623 = vmul.f32 %v620, %v23
  %v627 = vrot.slane %v621, 4
  %v628 = vrot.slane %v622, 4
  %v629 = vsel %vm531, %v627, %v628
  %v630 = vrot.slane %v623, 4
  %v631 = vsel %vm531, %v628, %v630
  %v635 = vadd.f32 %v482, %v629
  %v636 = vadd.f32 %v483, %v631
  %v637 = vadd.f32 %v484, %v630
  %s638 = sld [smem:[#allocation3 + $0x7c]]
  %v639 = vstv %s638
  %v640 = vmul.f32 %v639, %v21
  %v641 = vmul.f32 %v639, %v22
  %v642 = vmul.f32 %v639, %v23
  %v646 = vrot.slane %v640, 4
  %v647 = vrot.slane %v641, 4
  %v648 = vsel %vm531, %v646, %v647
  %v649 = vrot.slane %v642, 4
  %v650 = vsel %vm531, %v647, %v649
  %v654 = vadd.f32 %v501, %v648
  %v655 = vadd.f32 %v502, %v650
  %v656 = vadd.f32 %v503, %v649
  %s657 = sld [smem:[#allocation3 + $0x90]]
  %v658 = vstv %s657
  %v659 = vmul.f32 %v658, %v21
  %v660 = vmul.f32 %v658, %v22
  %v661 = vmul.f32 %v658, %v23
  %v665 = vrot.slane %v659, 4
  %v666 = vrot.slane %v660, 4
  %v667 = vsel %vm531, %v665, %v666
  %v668 = vrot.slane %v661, 4
  %v669 = vsel %vm531, %v666, %v668
  %v673 = vadd.f32 %v520, %v667
  %v674 = vadd.f32 %v521, %v669
  %v675 = vadd.f32 %v522, %v668
  %s676 = scalar_lea.vmem %s2, 12
  %v677 = vld [vmem:[%s676] sm:$0xf]
  %v678 = vld [vmem:[%s676 + $0x4] sm:$0xf]
  %v679 = vld [vmem:[%s676 + $0x8] sm:$0x7]
  %v680 = vunpack.c.l.bf16 %v677
  %v681 = vunpack.c.l.bf16 %v678
  %v682 = vunpack.c.l.bf16 %v679
  %s683 = sld [smem:[#allocation3 + $0x5]]
  %v684 = vstv %s683
  %v685 = vmul.f32 %v684, %v680
  %v686 = vmul.f32 %v684, %v681
  %v687 = vmul.f32 %v684, %v682
  %v688 = vadd.f32 %v540, %v685
  %v689 = vadd.f32 %v541, %v686
  %v690 = vadd.f32 %v542, %v687
  %s691 = sld [smem:[#allocation3 + $0x19]]
  %v692 = vstv %s691
  %v693 = vmul.f32 %v692, %v680
  %v694 = vmul.f32 %v692, %v681
  %v695 = vmul.f32 %v692, %v682
  %v696 = vadd.f32 %v559, %v693
  %v697 = vadd.f32 %v560, %v694
  %v698 = vadd.f32 %v561, %v695
  %s699 = sld [smem:[#allocation3 + $0x2d]]
  %v700 = vstv %s699
  %v701 = vmul.f32 %v700, %v680
  %v702 = vmul.f32 %v700, %v681
  %v703 = vmul.f32 %v700, %v682
  %v704 = vadd.f32 %v578, %v701
  %v705 = vadd.f32 %v579, %v702
  %v706 = vadd.f32 %v580, %v703
  %s707 = sld [smem:[#allocation3 + $0x41]]
  %v708 = vstv %s707
  %v709 = vmul.f32 %v708, %v680
  %v710 = vmul.f32 %v708, %v681
  %v711 = vmul.f32 %v708, %v682
  %v712 = vadd.f32 %v597, %v709
  %v713 = vadd.f32 %v598, %v710
  %v714 = vadd.f32 %v599, %v711
  %s715 = sld [smem:[#allocation3 + $0x55]]
  %v716 = vstv %s715
  %v717 = vmul.f32 %v716, %v680
  %v718 = vmul.f32 %v716, %v681
  %v719 = vmul.f32 %v716, %v682
  %v720 = vadd.f32 %v616, %v717
  %v721 = vadd.f32 %v617, %v718
  %v722 = vadd.f32 %v618, %v719
  %s723 = sld [smem:[#allocation3 + $0x69]]
  %v724 = vstv %s723
  %v725 = vmul.f32 %v724, %v680
  %v726 = vmul.f32 %v724, %v681
  %v727 = vmul.f32 %v724, %v682
  %v728 = vadd.f32 %v635, %v725
  %v729 = vadd.f32 %v636, %v726
  %v730 = vadd.f32 %v637, %v727
  %s731 = sld [smem:[#allocation3 + $0x7d]]
  %v732 = vstv %s731
  %v733 = vmul.f32 %v732, %v680
  %v734 = vmul.f32 %v732, %v681
  %v735 = vmul.f32 %v732, %v682
  %v736 = vadd.f32 %v654, %v733
  %v737 = vadd.f32 %v655, %v734
  %v738 = vadd.f32 %v656, %v735
  %s739 = sld [smem:[#allocation3 + $0x91]]
  %v740 = vstv %s739
  %v741 = vmul.f32 %v740, %v680
  %v742 = vmul.f32 %v740, %v681
  %v743 = vmul.f32 %v740, %v682
  %v744 = vadd.f32 %v673, %v741
  %v745 = vadd.f32 %v674, %v742
  %v746 = vadd.f32 %v675, %v743
  %s747 = sld [smem:[#allocation3 + $0x6]]
  %v748 = vstv %s747
  %v749 = vmul.f32 %v748, %v680
  %v750 = vmul.f32 %v748, %v681
  %v751 = vmul.f32 %v748, %v682
  %v755 = vrot.slane %v749, 1
  %v756 = vrot.slane %v750, 1
  %v757 = vsel %vm72, %v755, %v756
  %v758 = vrot.slane %v751, 1
  %v759 = vsel %vm72, %v756, %v758
  %v763 = vadd.f32 %v688, %v757
  %v764 = vadd.f32 %v689, %v759
  %v765 = vadd.f32 %v690, %v758
  %s766 = sld [smem:[#allocation3 + $0x1a]]
  %v767 = vstv %s766
  %v768 = vmul.f32 %v767, %v680
  %v769 = vmul.f32 %v767, %v681
  %v770 = vmul.f32 %v767, %v682
  %v774 = vrot.slane %v768, 1
  %v775 = vrot.slane %v769, 1
  %v776 = vsel %vm72, %v774, %v775
  %v777 = vrot.slane %v770, 1
  %v778 = vsel %vm72, %v775, %v777
  %v782 = vadd.f32 %v696, %v776
  %v783 = vadd.f32 %v697, %v778
  %v784 = vadd.f32 %v698, %v777
  %s785 = sld [smem:[#allocation3 + $0x2e]]
  %v786 = vstv %s785
  %v787 = vmul.f32 %v786, %v680
  %v788 = vmul.f32 %v786, %v681
  %v789 = vmul.f32 %v786, %v682
  %v793 = vrot.slane %v787, 1
  %v794 = vrot.slane %v788, 1
  %v795 = vsel %vm72, %v793, %v794
  %v796 = vrot.slane %v789, 1
  %v797 = vsel %vm72, %v794, %v796
  %v801 = vadd.f32 %v704, %v795
  %v802 = vadd.f32 %v705, %v797
  %v803 = vadd.f32 %v706, %v796
  %s804 = sld [smem:[#allocation3 + $0x42]]
  %v805 = vstv %s804
  %v806 = vmul.f32 %v805, %v680
  %v807 = vmul.f32 %v805, %v681
  %v808 = vmul.f32 %v805, %v682
  %v812 = vrot.slane %v806, 1
  %v813 = vrot.slane %v807, 1
  %v814 = vsel %vm72, %v812, %v813
  %v815 = vrot.slane %v808, 1
  %v816 = vsel %vm72, %v813, %v815
  %v820 = vadd.f32 %v712, %v814
  %v821 = vadd.f32 %v713, %v816
  %v822 = vadd.f32 %v714, %v815
  %s823 = sld [smem:[#allocation3 + $0x56]]
  %v824 = vstv %s823
  %v825 = vmul.f32 %v824, %v680
  %v826 = vmul.f32 %v824, %v681
  %v827 = vmul.f32 %v824, %v682
  %v831 = vrot.slane %v825, 1
  %v832 = vrot.slane %v826, 1
  %v833 = vsel %vm72, %v831, %v832
  %v834 = vrot.slane %v827, 1
  %v835 = vsel %vm72, %v832, %v834
  %v839 = vadd.f32 %v720, %v833
  %v840 = vadd.f32 %v721, %v835
  %v841 = vadd.f32 %v722, %v834
  %s842 = sld [smem:[#allocation3 + $0x6a]]
  %v843 = vstv %s842
  %v844 = vmul.f32 %v843, %v680
  %v845 = vmul.f32 %v843, %v681
  %v846 = vmul.f32 %v843, %v682
  %v850 = vrot.slane %v844, 1
  %v851 = vrot.slane %v845, 1
  %v852 = vsel %vm72, %v850, %v851
  %v853 = vrot.slane %v846, 1
  %v854 = vsel %vm72, %v851, %v853
  %v858 = vadd.f32 %v728, %v852
  %v859 = vadd.f32 %v729, %v854
  %v860 = vadd.f32 %v730, %v853
  %s861 = sld [smem:[#allocation3 + $0x7e]]
  %v862 = vstv %s861
  %v863 = vmul.f32 %v862, %v680
  %v864 = vmul.f32 %v862, %v681
  %v865 = vmul.f32 %v862, %v682
  %v869 = vrot.slane %v863, 1
  %v870 = vrot.slane %v864, 1
  %v871 = vsel %vm72, %v869, %v870
  %v872 = vrot.slane %v865, 1
  %v873 = vsel %vm72, %v870, %v872
  %v877 = vadd.f32 %v736, %v871
  %v878 = vadd.f32 %v737, %v873
  %v879 = vadd.f32 %v738, %v872
  %s880 = sld [smem:[#allocation3 + $0x92]]
  %v881 = vstv %s880
  %v882 = vmul.f32 %v881, %v680
  %v883 = vmul.f32 %v881, %v681
  %v884 = vmul.f32 %v881, %v682
  %v888 = vrot.slane %v882, 1
  %v889 = vrot.slane %v883, 1
  %v890 = vsel %vm72, %v888, %v889
  %v891 = vrot.slane %v884, 1
  %v892 = vsel %vm72, %v889, %v891
  %v896 = vadd.f32 %v744, %v890
  %v897 = vadd.f32 %v745, %v892
  %v898 = vadd.f32 %v746, %v891
  %s899 = sld [smem:[#allocation3 + $0x7]]
  %v900 = vstv %s899
  %v901 = vmul.f32 %v900, %v680
  %v902 = vmul.f32 %v900, %v681
  %v903 = vmul.f32 %v900, %v682
  %v907 = vrot.slane %v901, 2
  %v908 = vrot.slane %v902, 2
  %v909 = vsel %vm225, %v907, %v908
  %v910 = vrot.slane %v903, 2
  %v911 = vsel %vm225, %v908, %v910
  %v915 = vadd.f32 %v763, %v909
  %v916 = vadd.f32 %v764, %v911
  %v917 = vadd.f32 %v765, %v910
  %s918 = sld [smem:[#allocation3 + $0x1b]]
  %v919 = vstv %s918
  %v920 = vmul.f32 %v919, %v680
  %v921 = vmul.f32 %v919, %v681
  %v922 = vmul.f32 %v919, %v682
  %v926 = vrot.slane %v920, 2
  %v927 = vrot.slane %v921, 2
  %v928 = vsel %vm225, %v926, %v927
  %v929 = vrot.slane %v922, 2
  %v930 = vsel %vm225, %v927, %v929
  %v934 = vadd.f32 %v782, %v928
  %v935 = vadd.f32 %v783, %v930
  %v936 = vadd.f32 %v784, %v929
  %s937 = sld [smem:[#allocation3 + $0x2f]]
  %v938 = vstv %s937
  %v939 = vmul.f32 %v938, %v680
  %v940 = vmul.f32 %v938, %v681
  %v941 = vmul.f32 %v938, %v682
  %v945 = vrot.slane %v939, 2
  %v946 = vrot.slane %v940, 2
  %v947 = vsel %vm225, %v945, %v946
  %v948 = vrot.slane %v941, 2
  %v949 = vsel %vm225, %v946, %v948
  %v953 = vadd.f32 %v801, %v947
  %v954 = vadd.f32 %v802, %v949
  %v955 = vadd.f32 %v803, %v948
  %s956 = sld [smem:[#allocation3 + $0x43]]
  %v957 = vstv %s956
  %v958 = vmul.f32 %v957, %v680
  %v959 = vmul.f32 %v957, %v681
  %v960 = vmul.f32 %v957, %v682
  %v964 = vrot.slane %v958, 2
  %v965 = vrot.slane %v959, 2
  %v966 = vsel %vm225, %v964, %v965
  %v967 = vrot.slane %v960, 2
  %v968 = vsel %vm225, %v965, %v967
  %v972 = vadd.f32 %v820, %v966
  %v973 = vadd.f32 %v821, %v968
  %v974 = vadd.f32 %v822, %v967
  %s975 = sld [smem:[#allocation3 + $0x57]]
  %v976 = vstv %s975
  %v977 = vmul.f32 %v976, %v680
  %v978 = vmul.f32 %v976, %v681
  %v979 = vmul.f32 %v976, %v682
  %v983 = vrot.slane %v977, 2
  %v984 = vrot.slane %v978, 2
  %v985 = vsel %vm225, %v983, %v984
  %v986 = vrot.slane %v979, 2
  %v987 = vsel %vm225, %v984, %v986
  %v991 = vadd.f32 %v839, %v985
  %v992 = vadd.f32 %v840, %v987
  %v993 = vadd.f32 %v841, %v986
  %s994 = sld [smem:[#allocation3 + $0x6b]]
  %v995 = vstv %s994
  %v996 = vmul.f32 %v995, %v680
  %v997 = vmul.f32 %v995, %v681
  %v998 = vmul.f32 %v995, %v682
  %v1002 = vrot.slane %v996, 2
  %v1003 = vrot.slane %v997, 2
  %v1004 = vsel %vm225, %v1002, %v1003
  %v1005 = vrot.slane %v998, 2
  %v1006 = vsel %vm225, %v1003, %v1005
  %v1010 = vadd.f32 %v858, %v1004
  %v1011 = vadd.f32 %v859, %v1006
  %v1012 = vadd.f32 %v860, %v1005
  %s1013 = sld [smem:[#allocation3 + $0x7f]]
  %v1014 = vstv %s1013
  %v1015 = vmul.f32 %v1014, %v680
  %v1016 = vmul.f32 %v1014, %v681
  %v1017 = vmul.f32 %v1014, %v682
  %v1021 = vrot.slane %v1015, 2
  %v1022 = vrot.slane %v1016, 2
  %v1023 = vsel %vm225, %v1021, %v1022
  %v1024 = vrot.slane %v1017, 2
  %v1025 = vsel %vm225, %v1022, %v1024
  %v1029 = vadd.f32 %v877, %v1023
  %v1030 = vadd.f32 %v878, %v1025
  %v1031 = vadd.f32 %v879, %v1024
  %s1032 = sld [smem:[#allocation3 + $0x93]]
  %v1033 = vstv %s1032
  %v1034 = vmul.f32 %v1033, %v680
  %v1035 = vmul.f32 %v1033, %v681
  %v1036 = vmul.f32 %v1033, %v682
  %v1040 = vrot.slane %v1034, 2
  %v1041 = vrot.slane %v1035, 2
  %v1042 = vsel %vm225, %v1040, %v1041
  %v1043 = vrot.slane %v1036, 2
  %v1044 = vsel %vm225, %v1041, %v1043
  %v1048 = vadd.f32 %v896, %v1042
  %v1049 = vadd.f32 %v897, %v1044
  %v1050 = vadd.f32 %v898, %v1043
  %s1051 = sld [smem:[#allocation3 + $0x8]]
  %v1052 = vstv %s1051
  %v1053 = vmul.f32 %v1052, %v680
  %v1054 = vmul.f32 %v1052, %v681
  %v1055 = vmul.f32 %v1052, %v682
  %v1059 = vrot.slane %v1053, 3
  %v1060 = vrot.slane %v1054, 3
  %v1061 = vsel %vm378, %v1059, %v1060
  %v1062 = vrot.slane %v1055, 3
  %v1063 = vsel %vm378, %v1060, %v1062
  %v1067 = vadd.f32 %v915, %v1061
  %v1068 = vadd.f32 %v916, %v1063
  %v1069 = vadd.f32 %v917, %v1062
  %s1070 = sld [smem:[#allocation3 + $0x1c]]
  %v1071 = vstv %s1070
  %v1072 = vmul.f32 %v1071, %v680
  %v1073 = vmul.f32 %v1071, %v681
  %v1074 = vmul.f32 %v1071, %v682
  %v1078 = vrot.slane %v1072, 3
  %v1079 = vrot.slane %v1073, 3
  %v1080 = vsel %vm378, %v1078, %v1079
  %v1081 = vrot.slane %v1074, 3
  %v1082 = vsel %vm378, %v1079, %v1081
  %v1086 = vadd.f32 %v934, %v1080
  %v1087 = vadd.f32 %v935, %v1082
  %v1088 = vadd.f32 %v936, %v1081
  %s1089 = sld [smem:[#allocation3 + $0x30]]
  %v1090 = vstv %s1089
  %v1091 = vmul.f32 %v1090, %v680
  %v1092 = vmul.f32 %v1090, %v681
  %v1093 = vmul.f32 %v1090, %v682
  %v1097 = vrot.slane %v1091, 3
  %v1098 = vrot.slane %v1092, 3
  %v1099 = vsel %vm378, %v1097, %v1098
  %v1100 = vrot.slane %v1093, 3
  %v1101 = vsel %vm378, %v1098, %v1100
  %v1105 = vadd.f32 %v953, %v1099
  %v1106 = vadd.f32 %v954, %v1101
  %v1107 = vadd.f32 %v955, %v1100
  %s1108 = sld [smem:[#allocation3 + $0x44]]
  %v1109 = vstv %s1108
  %v1110 = vmul.f32 %v1109, %v680
  %v1111 = vmul.f32 %v1109, %v681
  %v1112 = vmul.f32 %v1109, %v682
  %v1116 = vrot.slane %v1110, 3
  %v1117 = vrot.slane %v1111, 3
  %v1118 = vsel %vm378, %v1116, %v1117
  %v1119 = vrot.slane %v1112, 3
  %v1120 = vsel %vm378, %v1117, %v1119
  %v1124 = vadd.f32 %v972, %v1118
  %v1125 = vadd.f32 %v973, %v1120
  %v1126 = vadd.f32 %v974, %v1119
  %s1127 = sld [smem:[#allocation3 + $0x58]]
  %v1128 = vstv %s1127
  %v1129 = vmul.f32 %v1128, %v680
  %v1130 = vmul.f32 %v1128, %v681
  %v1131 = vmul.f32 %v1128, %v682
  %v1135 = vrot.slane %v1129, 3
  %v1136 = vrot.slane %v1130, 3
  %v1137 = vsel %vm378, %v1135, %v1136
  %v1138 = vrot.slane %v1131, 3
  %v1139 = vsel %vm378, %v1136, %v1138
  %v1143 = vadd.f32 %v991, %v1137
  %v1144 = vadd.f32 %v992, %v1139
  %v1145 = vadd.f32 %v993, %v1138
  %s1146 = sld [smem:[#allocation3 + $0x6c]]
  %v1147 = vstv %s1146
  %v1148 = vmul.f32 %v1147, %v680
  %v1149 = vmul.f32 %v1147, %v681
  %v1150 = vmul.f32 %v1147, %v682
  %v1154 = vrot.slane %v1148, 3
  %v1155 = vrot.slane %v1149, 3
  %v1156 = vsel %vm378, %v1154, %v1155
  %v1157 = vrot.slane %v1150, 3
  %v1158 = vsel %vm378, %v1155, %v1157
  %v1162 = vadd.f32 %v1010, %v1156
  %v1163 = vadd.f32 %v1011, %v1158
  %v1164 = vadd.f32 %v1012, %v1157
  %s1165 = sld [smem:[#allocation3 + $0x80]]
  %v1166 = vstv %s1165
  %v1167 = vmul.f32 %v1166, %v680
  %v1168 = vmul.f32 %v1166, %v681
  %v1169 = vmul.f32 %v1166, %v682
  %v1173 = vrot.slane %v1167, 3
  %v1174 = vrot.slane %v1168, 3
  %v1175 = vsel %vm378, %v1173, %v1174
  %v1176 = vrot.slane %v1169, 3
  %v1177 = vsel %vm378, %v1174, %v1176
  %v1181 = vadd.f32 %v1029, %v1175
  %v1182 = vadd.f32 %v1030, %v1177
  %v1183 = vadd.f32 %v1031, %v1176
  %s1184 = sld [smem:[#allocation3 + $0x94]]
  %v1185 = vstv %s1184
  %v1186 = vmul.f32 %v1185, %v680
  %v1187 = vmul.f32 %v1185, %v681
  %v1188 = vmul.f32 %v1185, %v682
  %v1192 = vrot.slane %v1186, 3
  %v1193 = vrot.slane %v1187, 3
  %v1194 = vsel %vm378, %v1192, %v1193
  %v1195 = vrot.slane %v1188, 3
  %v1196 = vsel %vm378, %v1193, %v1195
  %v1200 = vadd.f32 %v1048, %v1194
  %v1201 = vadd.f32 %v1049, %v1196
  %v1202 = vadd.f32 %v1050, %v1195
  %s1203 = sld [smem:[#allocation3 + $0x9]]
  %v1204 = vstv %s1203
  %v1205 = vmul.f32 %v1204, %v680
  %v1206 = vmul.f32 %v1204, %v681
  %v1207 = vmul.f32 %v1204, %v682
  %v1211 = vrot.slane %v1205, 4
  %v1212 = vrot.slane %v1206, 4
  %v1213 = vsel %vm531, %v1211, %v1212
  %v1214 = vrot.slane %v1207, 4
  %v1215 = vsel %vm531, %v1212, %v1214
  %v1219 = vadd.f32 %v1067, %v1213
  %v1220 = vadd.f32 %v1068, %v1215
  %v1221 = vadd.f32 %v1069, %v1214
  %s1222 = sld [smem:[#allocation3 + $0x1d]]
  %v1223 = vstv %s1222
  %v1224 = vmul.f32 %v1223, %v680
  %v1225 = vmul.f32 %v1223, %v681
  %v1226 = vmul.f32 %v1223, %v682
  %v1230 = vrot.slane %v1224, 4
  %v1231 = vrot.slane %v1225, 4
  %v1232 = vsel %vm531, %v1230, %v1231
  %v1233 = vrot.slane %v1226, 4
  %v1234 = vsel %vm531, %v1231, %v1233
  %v1238 = vadd.f32 %v1086, %v1232
  %v1239 = vadd.f32 %v1087, %v1234
  %v1240 = vadd.f32 %v1088, %v1233
  %s1241 = sld [smem:[#allocation3 + $0x31]]
  %v1242 = vstv %s1241
  %v1243 = vmul.f32 %v1242, %v680
  %v1244 = vmul.f32 %v1242, %v681
  %v1245 = vmul.f32 %v1242, %v682
  %v1249 = vrot.slane %v1243, 4
  %v1250 = vrot.slane %v1244, 4
  %v1251 = vsel %vm531, %v1249, %v1250
  %v1252 = vrot.slane %v1245, 4
  %v1253 = vsel %vm531, %v1250, %v1252
  %v1257 = vadd.f32 %v1105, %v1251
  %v1258 = vadd.f32 %v1106, %v1253
  %v1259 = vadd.f32 %v1107, %v1252
  %s1260 = sld [smem:[#allocation3 + $0x45]]
  %v1261 = vstv %s1260
  %v1262 = vmul.f32 %v1261, %v680
  %v1263 = vmul.f32 %v1261, %v681
  %v1264 = vmul.f32 %v1261, %v682
  %v1268 = vrot.slane %v1262, 4
  %v1269 = vrot.slane %v1263, 4
  %v1270 = vsel %vm531, %v1268, %v1269
  %v1271 = vrot.slane %v1264, 4
  %v1272 = vsel %vm531, %v1269, %v1271
  %v1276 = vadd.f32 %v1124, %v1270
  %v1277 = vadd.f32 %v1125, %v1272
  %v1278 = vadd.f32 %v1126, %v1271
  %s1279 = sld [smem:[#allocation3 + $0x59]]
  %v1280 = vstv %s1279
  %v1281 = vmul.f32 %v1280, %v680
  %v1282 = vmul.f32 %v1280, %v681
  %v1283 = vmul.f32 %v1280, %v682
  %v1287 = vrot.slane %v1281, 4
  %v1288 = vrot.slane %v1282, 4
  %v1289 = vsel %vm531, %v1287, %v1288
  %v1290 = vrot.slane %v1283, 4
  %v1291 = vsel %vm531, %v1288, %v1290
  %v1295 = vadd.f32 %v1143, %v1289
  %v1296 = vadd.f32 %v1144, %v1291
  %v1297 = vadd.f32 %v1145, %v1290
  %s1298 = sld [smem:[#allocation3 + $0x6d]]
  %v1299 = vstv %s1298
  %v1300 = vmul.f32 %v1299, %v680
  %v1301 = vmul.f32 %v1299, %v681
  %v1302 = vmul.f32 %v1299, %v682
  %v1306 = vrot.slane %v1300, 4
  %v1307 = vrot.slane %v1301, 4
  %v1308 = vsel %vm531, %v1306, %v1307
  %v1309 = vrot.slane %v1302, 4
  %v1310 = vsel %vm531, %v1307, %v1309
  %v1314 = vadd.f32 %v1162, %v1308
  %v1315 = vadd.f32 %v1163, %v1310
  %v1316 = vadd.f32 %v1164, %v1309
  %s1317 = sld [smem:[#allocation3 + $0x81]]
  %v1318 = vstv %s1317
  %v1319 = vmul.f32 %v1318, %v680
  %v1320 = vmul.f32 %v1318, %v681
  %v1321 = vmul.f32 %v1318, %v682
  %v1325 = vrot.slane %v1319, 4
  %v1326 = vrot.slane %v1320, 4
  %v1327 = vsel %vm531, %v1325, %v1326
  %v1328 = vrot.slane %v1321, 4
  %v1329 = vsel %vm531, %v1326, %v1328
  %v1333 = vadd.f32 %v1181, %v1327
  %v1334 = vadd.f32 %v1182, %v1329
  %v1335 = vadd.f32 %v1183, %v1328
  %s1336 = sld [smem:[#allocation3 + $0x95]]
  %v1337 = vstv %s1336
  %v1338 = vmul.f32 %v1337, %v680
  %v1339 = vmul.f32 %v1337, %v681
  %v1340 = vmul.f32 %v1337, %v682
  %v1344 = vrot.slane %v1338, 4
  %v1345 = vrot.slane %v1339, 4
  %v1346 = vsel %vm531, %v1344, %v1345
  %v1347 = vrot.slane %v1340, 4
  %v1348 = vsel %vm531, %v1345, %v1347
  %v1352 = vadd.f32 %v1200, %v1346
  %v1353 = vadd.f32 %v1201, %v1348
  %v1354 = vadd.f32 %v1202, %v1347
  %s1355 = scalar_lea.vmem %s2, 24
  %v1356 = vld [vmem:[%s1355] sm:$0xf]
  %v1357 = vld [vmem:[%s1355 + $0x4] sm:$0xf]
  %v1358 = vld [vmem:[%s1355 + $0x8] sm:$0x7]
  %v1359 = vunpack.c.l.bf16 %v1356
  %v1360 = vunpack.c.l.bf16 %v1357
  %v1361 = vunpack.c.l.bf16 %v1358
  %s1362 = sld [smem:[#allocation3 + $0xa]]
  %v1363 = vstv %s1362
  %v1364 = vmul.f32 %v1363, %v1359
  %v1365 = vmul.f32 %v1363, %v1360
  %v1366 = vmul.f32 %v1363, %v1361
  %v1367 = vadd.f32 %v1219, %v1364
  %v1368 = vadd.f32 %v1220, %v1365
  %v1369 = vadd.f32 %v1221, %v1366
  %s1370 = sld [smem:[#allocation3 + $0x1e]]
  %v1371 = vstv %s1370
  %v1372 = vmul.f32 %v1371, %v1359
  %v1373 = vmul.f32 %v1371, %v1360
  %v1374 = vmul.f32 %v1371, %v1361
  %v1375 = vadd.f32 %v1238, %v1372
  %v1376 = vadd.f32 %v1239, %v1373
  %v1377 = vadd.f32 %v1240, %v1374
  %s1378 = sld [smem:[#allocation3 + $0x32]]
  %v1379 = vstv %s1378
  %v1380 = vmul.f32 %v1379, %v1359
  %v1381 = vmul.f32 %v1379, %v1360
  %v1382 = vmul.f32 %v1379, %v1361
  %v1383 = vadd.f32 %v1257, %v1380
  %v1384 = vadd.f32 %v1258, %v1381
  %v1385 = vadd.f32 %v1259, %v1382
  %s1386 = sld [smem:[#allocation3 + $0x46]]
  %v1387 = vstv %s1386
  %v1388 = vmul.f32 %v1387, %v1359
  %v1389 = vmul.f32 %v1387, %v1360
  %v1390 = vmul.f32 %v1387, %v1361
  %v1391 = vadd.f32 %v1276, %v1388
  %v1392 = vadd.f32 %v1277, %v1389
  %v1393 = vadd.f32 %v1278, %v1390
  %s1394 = sld [smem:[#allocation3 + $0x5a]]
  %v1395 = vstv %s1394
  %v1396 = vmul.f32 %v1395, %v1359
  %v1397 = vmul.f32 %v1395, %v1360
  %v1398 = vmul.f32 %v1395, %v1361
  %v1399 = vadd.f32 %v1295, %v1396
  %v1400 = vadd.f32 %v1296, %v1397
  %v1401 = vadd.f32 %v1297, %v1398
  %s1402 = sld [smem:[#allocation3 + $0x6e]]
  %v1403 = vstv %s1402
  %v1404 = vmul.f32 %v1403, %v1359
  %v1405 = vmul.f32 %v1403, %v1360
  %v1406 = vmul.f32 %v1403, %v1361
  %v1407 = vadd.f32 %v1314, %v1404
  %v1408 = vadd.f32 %v1315, %v1405
  %v1409 = vadd.f32 %v1316, %v1406
  %s1410 = sld [smem:[#allocation3 + $0x82]]
  %v1411 = vstv %s1410
  %v1412 = vmul.f32 %v1411, %v1359
  %v1413 = vmul.f32 %v1411, %v1360
  %v1414 = vmul.f32 %v1411, %v1361
  %v1415 = vadd.f32 %v1333, %v1412
  %v1416 = vadd.f32 %v1334, %v1413
  %v1417 = vadd.f32 %v1335, %v1414
  %s1418 = sld [smem:[#allocation3 + $0x96]]
  %v1419 = vstv %s1418
  %v1420 = vmul.f32 %v1419, %v1359
  %v1421 = vmul.f32 %v1419, %v1360
  %v1422 = vmul.f32 %v1419, %v1361
  %v1423 = vadd.f32 %v1352, %v1420
  %v1424 = vadd.f32 %v1353, %v1421
  %v1425 = vadd.f32 %v1354, %v1422
  %s1426 = sld [smem:[#allocation3 + $0xb]]
  %v1427 = vstv %s1426
  %v1428 = vmul.f32 %v1427, %v1359
  %v1429 = vmul.f32 %v1427, %v1360
  %v1430 = vmul.f32 %v1427, %v1361
  %v1434 = vrot.slane %v1428, 1
  %v1435 = vrot.slane %v1429, 1
  %v1436 = vsel %vm72, %v1434, %v1435
  %v1437 = vrot.slane %v1430, 1
  %v1438 = vsel %vm72, %v1435, %v1437
  %v1442 = vadd.f32 %v1367, %v1436
  %v1443 = vadd.f32 %v1368, %v1438
  %v1444 = vadd.f32 %v1369, %v1437
  %s1445 = sld [smem:[#allocation3 + $0x1f]]
  %v1446 = vstv %s1445
  %v1447 = vmul.f32 %v1446, %v1359
  %v1448 = vmul.f32 %v1446, %v1360
  %v1449 = vmul.f32 %v1446, %v1361
  %v1453 = vrot.slane %v1447, 1
  %v1454 = vrot.slane %v1448, 1
  %v1455 = vsel %vm72, %v1453, %v1454
  %v1456 = vrot.slane %v1449, 1
  %v1457 = vsel %vm72, %v1454, %v1456
  %v1461 = vadd.f32 %v1375, %v1455
  %v1462 = vadd.f32 %v1376, %v1457
  %v1463 = vadd.f32 %v1377, %v1456
  %s1464 = sld [smem:[#allocation3 + $0x33]]
  %v1465 = vstv %s1464
  %v1466 = vmul.f32 %v1465, %v1359
  %v1467 = vmul.f32 %v1465, %v1360
  %v1468 = vmul.f32 %v1465, %v1361
  %v1472 = vrot.slane %v1466, 1
  %v1473 = vrot.slane %v1467, 1
  %v1474 = vsel %vm72, %v1472, %v1473
  %v1475 = vrot.slane %v1468, 1
  %v1476 = vsel %vm72, %v1473, %v1475
  %v1480 = vadd.f32 %v1383, %v1474
  %v1481 = vadd.f32 %v1384, %v1476
  %v1482 = vadd.f32 %v1385, %v1475
  %s1483 = sld [smem:[#allocation3 + $0x47]]
  %v1484 = vstv %s1483
  %v1485 = vmul.f32 %v1484, %v1359
  %v1486 = vmul.f32 %v1484, %v1360
  %v1487 = vmul.f32 %v1484, %v1361
  %v1491 = vrot.slane %v1485, 1
  %v1492 = vrot.slane %v1486, 1
  %v1493 = vsel %vm72, %v1491, %v1492
  %v1494 = vrot.slane %v1487, 1
  %v1495 = vsel %vm72, %v1492, %v1494
  %v1499 = vadd.f32 %v1391, %v1493
  %v1500 = vadd.f32 %v1392, %v1495
  %v1501 = vadd.f32 %v1393, %v1494
  %s1502 = sld [smem:[#allocation3 + $0x5b]]
  %v1503 = vstv %s1502
  %v1504 = vmul.f32 %v1503, %v1359
  %v1505 = vmul.f32 %v1503, %v1360
  %v1506 = vmul.f32 %v1503, %v1361
  %v1510 = vrot.slane %v1504, 1
  %v1511 = vrot.slane %v1505, 1
  %v1512 = vsel %vm72, %v1510, %v1511
  %v1513 = vrot.slane %v1506, 1
  %v1514 = vsel %vm72, %v1511, %v1513
  %v1518 = vadd.f32 %v1399, %v1512
  %v1519 = vadd.f32 %v1400, %v1514
  %v1520 = vadd.f32 %v1401, %v1513
  %s1521 = sld [smem:[#allocation3 + $0x6f]]
  %v1522 = vstv %s1521
  %v1523 = vmul.f32 %v1522, %v1359
  %v1524 = vmul.f32 %v1522, %v1360
  %v1525 = vmul.f32 %v1522, %v1361
  %v1529 = vrot.slane %v1523, 1
  %v1530 = vrot.slane %v1524, 1
  %v1531 = vsel %vm72, %v1529, %v1530
  %v1532 = vrot.slane %v1525, 1
  %v1533 = vsel %vm72, %v1530, %v1532
  %v1537 = vadd.f32 %v1407, %v1531
  %v1538 = vadd.f32 %v1408, %v1533
  %v1539 = vadd.f32 %v1409, %v1532
  %s1540 = sld [smem:[#allocation3 + $0x83]]
  %v1541 = vstv %s1540
  %v1542 = vmul.f32 %v1541, %v1359
  %v1543 = vmul.f32 %v1541, %v1360
  %v1544 = vmul.f32 %v1541, %v1361
  %v1548 = vrot.slane %v1542, 1
  %v1549 = vrot.slane %v1543, 1
  %v1550 = vsel %vm72, %v1548, %v1549
  %v1551 = vrot.slane %v1544, 1
  %v1552 = vsel %vm72, %v1549, %v1551
  %v1556 = vadd.f32 %v1415, %v1550
  %v1557 = vadd.f32 %v1416, %v1552
  %v1558 = vadd.f32 %v1417, %v1551
  %s1559 = sld [smem:[#allocation3 + $0x97]]
  %v1560 = vstv %s1559
  %v1561 = vmul.f32 %v1560, %v1359
  %v1562 = vmul.f32 %v1560, %v1360
  %v1563 = vmul.f32 %v1560, %v1361
  %v1567 = vrot.slane %v1561, 1
  %v1568 = vrot.slane %v1562, 1
  %v1569 = vsel %vm72, %v1567, %v1568
  %v1570 = vrot.slane %v1563, 1
  %v1571 = vsel %vm72, %v1568, %v1570
  %v1575 = vadd.f32 %v1423, %v1569
  %v1576 = vadd.f32 %v1424, %v1571
  %v1577 = vadd.f32 %v1425, %v1570
  %s1578 = sld [smem:[#allocation3 + $0xc]]
  %v1579 = vstv %s1578
  %v1580 = vmul.f32 %v1579, %v1359
  %v1581 = vmul.f32 %v1579, %v1360
  %v1582 = vmul.f32 %v1579, %v1361
  %v1586 = vrot.slane %v1580, 2
  %v1587 = vrot.slane %v1581, 2
  %v1588 = vsel %vm225, %v1586, %v1587
  %v1589 = vrot.slane %v1582, 2
  %v1590 = vsel %vm225, %v1587, %v1589
  %v1594 = vadd.f32 %v1442, %v1588
  %v1595 = vadd.f32 %v1443, %v1590
  %v1596 = vadd.f32 %v1444, %v1589
  %s1597 = sld [smem:[#allocation3 + $0x20]]
  %v1598 = vstv %s1597
  %v1599 = vmul.f32 %v1598, %v1359
  %v1600 = vmul.f32 %v1598, %v1360
  %v1601 = vmul.f32 %v1598, %v1361
  %v1605 = vrot.slane %v1599, 2
  %v1606 = vrot.slane %v1600, 2
  %v1607 = vsel %vm225, %v1605, %v1606
  %v1608 = vrot.slane %v1601, 2
  %v1609 = vsel %vm225, %v1606, %v1608
  %v1613 = vadd.f32 %v1461, %v1607
  %v1614 = vadd.f32 %v1462, %v1609
  %v1615 = vadd.f32 %v1463, %v1608
  %s1616 = sld [smem:[#allocation3 + $0x34]]
  %v1617 = vstv %s1616
  %v1618 = vmul.f32 %v1617, %v1359
  %v1619 = vmul.f32 %v1617, %v1360
  %v1620 = vmul.f32 %v1617, %v1361
  %v1624 = vrot.slane %v1618, 2
  %v1625 = vrot.slane %v1619, 2
  %v1626 = vsel %vm225, %v1624, %v1625
  %v1627 = vrot.slane %v1620, 2
  %v1628 = vsel %vm225, %v1625, %v1627
  %v1632 = vadd.f32 %v1480, %v1626
  %v1633 = vadd.f32 %v1481, %v1628
  %v1634 = vadd.f32 %v1482, %v1627
  %s1635 = sld [smem:[#allocation3 + $0x48]]
  %v1636 = vstv %s1635
  %v1637 = vmul.f32 %v1636, %v1359
  %v1638 = vmul.f32 %v1636, %v1360
  %v1639 = vmul.f32 %v1636, %v1361
  %v1643 = vrot.slane %v1637, 2
  %v1644 = vrot.slane %v1638, 2
  %v1645 = vsel %vm225, %v1643, %v1644
  %v1646 = vrot.slane %v1639, 2
  %v1647 = vsel %vm225, %v1644, %v1646
  %v1651 = vadd.f32 %v1499, %v1645
  %v1652 = vadd.f32 %v1500, %v1647
  %v1653 = vadd.f32 %v1501, %v1646
  %s1654 = sld [smem:[#allocation3 + $0x5c]]
  %v1655 = vstv %s1654
  %v1656 = vmul.f32 %v1655, %v1359
  %v1657 = vmul.f32 %v1655, %v1360
  %v1658 = vmul.f32 %v1655, %v1361
  %v1662 = vrot.slane %v1656, 2
  %v1663 = vrot.slane %v1657, 2
  %v1664 = vsel %vm225, %v1662, %v1663
  %v1665 = vrot.slane %v1658, 2
  %v1666 = vsel %vm225, %v1663, %v1665
  %v1670 = vadd.f32 %v1518, %v1664
  %v1671 = vadd.f32 %v1519, %v1666
  %v1672 = vadd.f32 %v1520, %v1665
  %s1673 = sld [smem:[#allocation3 + $0x70]]
  %v1674 = vstv %s1673
  %v1675 = vmul.f32 %v1674, %v1359
  %v1676 = vmul.f32 %v1674, %v1360
  %v1677 = vmul.f32 %v1674, %v1361
  %v1681 = vrot.slane %v1675, 2
  %v1682 = vrot.slane %v1676, 2
  %v1683 = vsel %vm225, %v1681, %v1682
  %v1684 = vrot.slane %v1677, 2
  %v1685 = vsel %vm225, %v1682, %v1684
  %v1689 = vadd.f32 %v1537, %v1683
  %v1690 = vadd.f32 %v1538, %v1685
  %v1691 = vadd.f32 %v1539, %v1684
  %s1692 = sld [smem:[#allocation3 + $0x84]]
  %v1693 = vstv %s1692
  %v1694 = vmul.f32 %v1693, %v1359
  %v1695 = vmul.f32 %v1693, %v1360
  %v1696 = vmul.f32 %v1693, %v1361
  %v1700 = vrot.slane %v1694, 2
  %v1701 = vrot.slane %v1695, 2
  %v1702 = vsel %vm225, %v1700, %v1701
  %v1703 = vrot.slane %v1696, 2
  %v1704 = vsel %vm225, %v1701, %v1703
  %v1708 = vadd.f32 %v1556, %v1702
  %v1709 = vadd.f32 %v1557, %v1704
  %v1710 = vadd.f32 %v1558, %v1703
  %s1711 = sld [smem:[#allocation3 + $0x98]]
  %v1712 = vstv %s1711
  %v1713 = vmul.f32 %v1712, %v1359
  %v1714 = vmul.f32 %v1712, %v1360
  %v1715 = vmul.f32 %v1712, %v1361
  %v1719 = vrot.slane %v1713, 2
  %v1720 = vrot.slane %v1714, 2
  %v1721 = vsel %vm225, %v1719, %v1720
  %v1722 = vrot.slane %v1715, 2
  %v1723 = vsel %vm225, %v1720, %v1722
  %v1727 = vadd.f32 %v1575, %v1721
  %v1728 = vadd.f32 %v1576, %v1723
  %v1729 = vadd.f32 %v1577, %v1722
  %s1730 = sld [smem:[#allocation3 + $0xd]]
  %v1731 = vstv %s1730
  %v1732 = vmul.f32 %v1731, %v1359
  %v1733 = vmul.f32 %v1731, %v1360
  %v1734 = vmul.f32 %v1731, %v1361
  %v1738 = vrot.slane %v1732, 3
  %v1739 = vrot.slane %v1733, 3
  %v1740 = vsel %vm378, %v1738, %v1739
  %v1741 = vrot.slane %v1734, 3
  %v1742 = vsel %vm378, %v1739, %v1741
  %v1746 = vadd.f32 %v1594, %v1740
  %v1747 = vadd.f32 %v1595, %v1742
  %v1748 = vadd.f32 %v1596, %v1741
  %s1749 = sld [smem:[#allocation3 + $0x21]]
  %v1750 = vstv %s1749
  %v1751 = vmul.f32 %v1750, %v1359
  %v1752 = vmul.f32 %v1750, %v1360
  %v1753 = vmul.f32 %v1750, %v1361
  %v1757 = vrot.slane %v1751, 3
  %v1758 = vrot.slane %v1752, 3
  %v1759 = vsel %vm378, %v1757, %v1758
  %v1760 = vrot.slane %v1753, 3
  %v1761 = vsel %vm378, %v1758, %v1760
  %v1765 = vadd.f32 %v1613, %v1759
  %v1766 = vadd.f32 %v1614, %v1761
  %v1767 = vadd.f32 %v1615, %v1760
  %s1768 = sld [smem:[#allocation3 + $0x35]]
  %v1769 = vstv %s1768
  %v1770 = vmul.f32 %v1769, %v1359
  %v1771 = vmul.f32 %v1769, %v1360
  %v1772 = vmul.f32 %v1769, %v1361
  %v1776 = vrot.slane %v1770, 3
  %v1777 = vrot.slane %v1771, 3
  %v1778 = vsel %vm378, %v1776, %v1777
  %v1779 = vrot.slane %v1772, 3
  %v1780 = vsel %vm378, %v1777, %v1779
  %v1784 = vadd.f32 %v1632, %v1778
  %v1785 = vadd.f32 %v1633, %v1780
  %v1786 = vadd.f32 %v1634, %v1779
  %s1787 = sld [smem:[#allocation3 + $0x49]]
  %v1788 = vstv %s1787
  %v1789 = vmul.f32 %v1788, %v1359
  %v1790 = vmul.f32 %v1788, %v1360
  %v1791 = vmul.f32 %v1788, %v1361
  %v1795 = vrot.slane %v1789, 3
  %v1796 = vrot.slane %v1790, 3
  %v1797 = vsel %vm378, %v1795, %v1796
  %v1798 = vrot.slane %v1791, 3
  %v1799 = vsel %vm378, %v1796, %v1798
  %v1803 = vadd.f32 %v1651, %v1797
  %v1804 = vadd.f32 %v1652, %v1799
  %v1805 = vadd.f32 %v1653, %v1798
  %s1806 = sld [smem:[#allocation3 + $0x5d]]
  %v1807 = vstv %s1806
  %v1808 = vmul.f32 %v1807, %v1359
  %v1809 = vmul.f32 %v1807, %v1360
  %v1810 = vmul.f32 %v1807, %v1361
  %v1814 = vrot.slane %v1808, 3
  %v1815 = vrot.slane %v1809, 3
  %v1816 = vsel %vm378, %v1814, %v1815
  %v1817 = vrot.slane %v1810, 3
  %v1818 = vsel %vm378, %v1815, %v1817
  %v1822 = vadd.f32 %v1670, %v1816
  %v1823 = vadd.f32 %v1671, %v1818
  %v1824 = vadd.f32 %v1672, %v1817
  %s1825 = sld [smem:[#allocation3 + $0x71]]
  %v1826 = vstv %s1825
  %v1827 = vmul.f32 %v1826, %v1359
  %v1828 = vmul.f32 %v1826, %v1360
  %v1829 = vmul.f32 %v1826, %v1361
  %v1833 = vrot.slane %v1827, 3
  %v1834 = vrot.slane %v1828, 3
  %v1835 = vsel %vm378, %v1833, %v1834
  %v1836 = vrot.slane %v1829, 3
  %v1837 = vsel %vm378, %v1834, %v1836
  %v1841 = vadd.f32 %v1689, %v1835
  %v1842 = vadd.f32 %v1690, %v1837
  %v1843 = vadd.f32 %v1691, %v1836
  %s1844 = sld [smem:[#allocation3 + $0x85]]
  %v1845 = vstv %s1844
  %v1846 = vmul.f32 %v1845, %v1359
  %v1847 = vmul.f32 %v1845, %v1360
  %v1848 = vmul.f32 %v1845, %v1361
  %v1852 = vrot.slane %v1846, 3
  %v1853 = vrot.slane %v1847, 3
  %v1854 = vsel %vm378, %v1852, %v1853
  %v1855 = vrot.slane %v1848, 3
  %v1856 = vsel %vm378, %v1853, %v1855
  %v1860 = vadd.f32 %v1708, %v1854
  %v1861 = vadd.f32 %v1709, %v1856
  %v1862 = vadd.f32 %v1710, %v1855
  %s1863 = sld [smem:[#allocation3 + $0x99]]
  %v1864 = vstv %s1863
  %v1865 = vmul.f32 %v1864, %v1359
  %v1866 = vmul.f32 %v1864, %v1360
  %v1867 = vmul.f32 %v1864, %v1361
  %v1871 = vrot.slane %v1865, 3
  %v1872 = vrot.slane %v1866, 3
  %v1873 = vsel %vm378, %v1871, %v1872
  %v1874 = vrot.slane %v1867, 3
  %v1875 = vsel %vm378, %v1872, %v1874
  %v1879 = vadd.f32 %v1727, %v1873
  %v1880 = vadd.f32 %v1728, %v1875
  %v1881 = vadd.f32 %v1729, %v1874
  %s1882 = sld [smem:[#allocation3 + $0xe]]
  %v1883 = vstv %s1882
  %v1884 = vmul.f32 %v1883, %v1359
  %v1885 = vmul.f32 %v1883, %v1360
  %v1886 = vmul.f32 %v1883, %v1361
  %v1890 = vrot.slane %v1884, 4
  %v1891 = vrot.slane %v1885, 4
  %v1892 = vsel %vm531, %v1890, %v1891
  %v1893 = vrot.slane %v1886, 4
  %v1894 = vsel %vm531, %v1891, %v1893
  %v1898 = vadd.f32 %v1746, %v1892
  %v1899 = vadd.f32 %v1747, %v1894
  %v1900 = vadd.f32 %v1748, %v1893
  %s1901 = sld [smem:[#allocation3 + $0x22]]
  %v1902 = vstv %s1901
  %v1903 = vmul.f32 %v1902, %v1359
  %v1904 = vmul.f32 %v1902, %v1360
  %v1905 = vmul.f32 %v1902, %v1361
  %v1909 = vrot.slane %v1903, 4
  %v1910 = vrot.slane %v1904, 4
  %v1911 = vsel %vm531, %v1909, %v1910
  %v1912 = vrot.slane %v1905, 4
  %v1913 = vsel %vm531, %v1910, %v1912
  %v1917 = vadd.f32 %v1765, %v1911
  %v1918 = vadd.f32 %v1766, %v1913
  %v1919 = vadd.f32 %v1767, %v1912
  %s1920 = sld [smem:[#allocation3 + $0x36]]
  %v1921 = vstv %s1920
  %v1922 = vmul.f32 %v1921, %v1359
  %v1923 = vmul.f32 %v1921, %v1360
  %v1924 = vmul.f32 %v1921, %v1361
  %v1928 = vrot.slane %v1922, 4
  %v1929 = vrot.slane %v1923, 4
  %v1930 = vsel %vm531, %v1928, %v1929
  %v1931 = vrot.slane %v1924, 4
  %v1932 = vsel %vm531, %v1929, %v1931
  %v1936 = vadd.f32 %v1784, %v1930
  %v1937 = vadd.f32 %v1785, %v1932
  %v1938 = vadd.f32 %v1786, %v1931
  %s1939 = sld [smem:[#allocation3 + $0x4a]]
  %v1940 = vstv %s1939
  %v1941 = vmul.f32 %v1940, %v1359
  %v1942 = vmul.f32 %v1940, %v1360
  %v1943 = vmul.f32 %v1940, %v1361
  %v1947 = vrot.slane %v1941, 4
  %v1948 = vrot.slane %v1942, 4
  %v1949 = vsel %vm531, %v1947, %v1948
  %v1950 = vrot.slane %v1943, 4
  %v1951 = vsel %vm531, %v1948, %v1950
  %v1955 = vadd.f32 %v1803, %v1949
  %v1956 = vadd.f32 %v1804, %v1951
  %v1957 = vadd.f32 %v1805, %v1950
  %s1958 = sld [smem:[#allocation3 + $0x5e]]
  %v1959 = vstv %s1958
  %v1960 = vmul.f32 %v1959, %v1359
  %v1961 = vmul.f32 %v1959, %v1360
  %v1962 = vmul.f32 %v1959, %v1361
  %v1966 = vrot.slane %v1960, 4
  %v1967 = vrot.slane %v1961, 4
  %v1968 = vsel %vm531, %v1966, %v1967
  %v1969 = vrot.slane %v1962, 4
  %v1970 = vsel %vm531, %v1967, %v1969
  %v1974 = vadd.f32 %v1822, %v1968
  %v1975 = vadd.f32 %v1823, %v1970
  %v1976 = vadd.f32 %v1824, %v1969
  %s1977 = sld [smem:[#allocation3 + $0x72]]
  %v1978 = vstv %s1977
  %v1979 = vmul.f32 %v1978, %v1359
  %v1980 = vmul.f32 %v1978, %v1360
  %v1981 = vmul.f32 %v1978, %v1361
  %v1985 = vrot.slane %v1979, 4
  %v1986 = vrot.slane %v1980, 4
  %v1987 = vsel %vm531, %v1985, %v1986
  %v1988 = vrot.slane %v1981, 4
  %v1989 = vsel %vm531, %v1986, %v1988
  %v1993 = vadd.f32 %v1841, %v1987
  %v1994 = vadd.f32 %v1842, %v1989
  %v1995 = vadd.f32 %v1843, %v1988
  %s1996 = sld [smem:[#allocation3 + $0x86]]
  %v1997 = vstv %s1996
  %v1998 = vmul.f32 %v1997, %v1359
  %v1999 = vmul.f32 %v1997, %v1360
  %v2000 = vmul.f32 %v1997, %v1361
  %v2004 = vrot.slane %v1998, 4
  %v2005 = vrot.slane %v1999, 4
  %v2006 = vsel %vm531, %v2004, %v2005
  %v2007 = vrot.slane %v2000, 4
  %v2008 = vsel %vm531, %v2005, %v2007
  %v2012 = vadd.f32 %v1860, %v2006
  %v2013 = vadd.f32 %v1861, %v2008
  %v2014 = vadd.f32 %v1862, %v2007
  %s2015 = sld [smem:[#allocation3 + $0x9a]]
  %v2016 = vstv %s2015
  %v2017 = vmul.f32 %v2016, %v1359
  %v2018 = vmul.f32 %v2016, %v1360
  %v2019 = vmul.f32 %v2016, %v1361
  %v2023 = vrot.slane %v2017, 4
  %v2024 = vrot.slane %v2018, 4
  %v2025 = vsel %vm531, %v2023, %v2024
  %v2026 = vrot.slane %v2019, 4
  %v2027 = vsel %vm531, %v2024, %v2026
  %v2031 = vadd.f32 %v1879, %v2025
  %v2032 = vadd.f32 %v1880, %v2027
  %v2033 = vadd.f32 %v1881, %v2026
  %s2034 = scalar_lea.vmem %s2, 36
  %v2035 = vld [vmem:[%s2034] sm:$0xf]
  %v2036 = vld [vmem:[%s2034 + $0x4] sm:$0xf]
  %v2037 = vld [vmem:[%s2034 + $0x8] sm:$0x7]
  %v2038 = vunpack.c.l.bf16 %v2035
  %v2039 = vunpack.c.l.bf16 %v2036
  %v2040 = vunpack.c.l.bf16 %v2037
  %s2041 = sld [smem:[#allocation3 + $0xf]]
  %v2042 = vstv %s2041
  %v2043 = vmul.f32 %v2042, %v2038
  %v2044 = vmul.f32 %v2042, %v2039
  %v2045 = vmul.f32 %v2042, %v2040
  %v2046 = vadd.f32 %v1898, %v2043
  %v2047 = vadd.f32 %v1899, %v2044
  %v2048 = vadd.f32 %v1900, %v2045
  %s2049 = sld [smem:[#allocation3 + $0x23]]
  %v2050 = vstv %s2049
  %v2051 = vmul.f32 %v2050, %v2038
  %v2052 = vmul.f32 %v2050, %v2039
  %v2053 = vmul.f32 %v2050, %v2040
  %v2054 = vadd.f32 %v1917, %v2051
  %v2055 = vadd.f32 %v1918, %v2052
  %v2056 = vadd.f32 %v1919, %v2053
  %s2057 = sld [smem:[#allocation3 + $0x37]]
  %v2058 = vstv %s2057
  %v2059 = vmul.f32 %v2058, %v2038
  %v2060 = vmul.f32 %v2058, %v2039
  %v2061 = vmul.f32 %v2058, %v2040
  %v2062 = vadd.f32 %v1936, %v2059
  %v2063 = vadd.f32 %v1937, %v2060
  %v2064 = vadd.f32 %v1938, %v2061
  %s2065 = sld [smem:[#allocation3 + $0x4b]]
  %v2066 = vstv %s2065
  %v2067 = vmul.f32 %v2066, %v2038
  %v2068 = vmul.f32 %v2066, %v2039
  %v2069 = vmul.f32 %v2066, %v2040
  %v2070 = vadd.f32 %v1955, %v2067
  %v2071 = vadd.f32 %v1956, %v2068
  %v2072 = vadd.f32 %v1957, %v2069
  %s2073 = sld [smem:[#allocation3 + $0x5f]]
  %v2074 = vstv %s2073
  %v2075 = vmul.f32 %v2074, %v2038
  %v2076 = vmul.f32 %v2074, %v2039
  %v2077 = vmul.f32 %v2074, %v2040
  %v2078 = vadd.f32 %v1974, %v2075
  %v2079 = vadd.f32 %v1975, %v2076
  %v2080 = vadd.f32 %v1976, %v2077
  %s2081 = sld [smem:[#allocation3 + $0x73]]
  %v2082 = vstv %s2081
  %v2083 = vmul.f32 %v2082, %v2038
  %v2084 = vmul.f32 %v2082, %v2039
  %v2085 = vmul.f32 %v2082, %v2040
  %v2086 = vadd.f32 %v1993, %v2083
  %v2087 = vadd.f32 %v1994, %v2084
  %v2088 = vadd.f32 %v1995, %v2085
  %s2089 = sld [smem:[#allocation3 + $0x87]]
  %v2090 = vstv %s2089
  %v2091 = vmul.f32 %v2090, %v2038
  %v2092 = vmul.f32 %v2090, %v2039
  %v2093 = vmul.f32 %v2090, %v2040
  %v2094 = vadd.f32 %v2012, %v2091
  %v2095 = vadd.f32 %v2013, %v2092
  %v2096 = vadd.f32 %v2014, %v2093
  %s2097 = sld [smem:[#allocation3 + $0x9b]]
  %v2098 = vstv %s2097
  %v2099 = vmul.f32 %v2098, %v2038
  %v2100 = vmul.f32 %v2098, %v2039
  %v2101 = vmul.f32 %v2098, %v2040
  %v2102 = vadd.f32 %v2031, %v2099
  %v2103 = vadd.f32 %v2032, %v2100
  %v2104 = vadd.f32 %v2033, %v2101
  %s2105 = sld [smem:[#allocation3 + $0x10]]
  %v2106 = vstv %s2105
  %v2107 = vmul.f32 %v2106, %v2038
  %v2108 = vmul.f32 %v2106, %v2039
  %v2109 = vmul.f32 %v2106, %v2040
  %v2113 = vrot.slane %v2107, 1
  %v2114 = vrot.slane %v2108, 1
  %v2115 = vsel %vm72, %v2113, %v2114
  %v2116 = vrot.slane %v2109, 1
  %v2117 = vsel %vm72, %v2114, %v2116
  %v2121 = vadd.f32 %v2046, %v2115
  %v2122 = vadd.f32 %v2047, %v2117
  %v2123 = vadd.f32 %v2048, %v2116
  %s2124 = sld [smem:[#allocation3 + $0x24]]
  %v2125 = vstv %s2124
  %v2126 = vmul.f32 %v2125, %v2038
  %v2127 = vmul.f32 %v2125, %v2039
  %v2128 = vmul.f32 %v2125, %v2040
  %v2132 = vrot.slane %v2126, 1
  %v2133 = vrot.slane %v2127, 1
  %v2134 = vsel %vm72, %v2132, %v2133
  %v2135 = vrot.slane %v2128, 1
  %v2136 = vsel %vm72, %v2133, %v2135
  %v2140 = vadd.f32 %v2054, %v2134
  %v2141 = vadd.f32 %v2055, %v2136
  %v2142 = vadd.f32 %v2056, %v2135
  %s2143 = sld [smem:[#allocation3 + $0x38]]
  %v2144 = vstv %s2143
  %v2145 = vmul.f32 %v2144, %v2038
  %v2146 = vmul.f32 %v2144, %v2039
  %v2147 = vmul.f32 %v2144, %v2040
  %v2151 = vrot.slane %v2145, 1
  %v2152 = vrot.slane %v2146, 1
  %v2153 = vsel %vm72, %v2151, %v2152
  %v2154 = vrot.slane %v2147, 1
  %v2155 = vsel %vm72, %v2152, %v2154
  %v2159 = vadd.f32 %v2062, %v2153
  %v2160 = vadd.f32 %v2063, %v2155
  %v2161 = vadd.f32 %v2064, %v2154
  %s2162 = sld [smem:[#allocation3 + $0x4c]]
  %v2163 = vstv %s2162
  %v2164 = vmul.f32 %v2163, %v2038
  %v2165 = vmul.f32 %v2163, %v2039
  %v2166 = vmul.f32 %v2163, %v2040
  %v2170 = vrot.slane %v2164, 1
  %v2171 = vrot.slane %v2165, 1
  %v2172 = vsel %vm72, %v2170, %v2171
  %v2173 = vrot.slane %v2166, 1
  %v2174 = vsel %vm72, %v2171, %v2173
  %v2178 = vadd.f32 %v2070, %v2172
  %v2179 = vadd.f32 %v2071, %v2174
  %v2180 = vadd.f32 %v2072, %v2173
  %s2181 = sld [smem:[#allocation3 + $0x60]]
  %v2182 = vstv %s2181
  %v2183 = vmul.f32 %v2182, %v2038
  %v2184 = vmul.f32 %v2182, %v2039
  %v2185 = vmul.f32 %v2182, %v2040
  %v2189 = vrot.slane %v2183, 1
  %v2190 = vrot.slane %v2184, 1
  %v2191 = vsel %vm72, %v2189, %v2190
  %v2192 = vrot.slane %v2185, 1
  %v2193 = vsel %vm72, %v2190, %v2192
  %v2197 = vadd.f32 %v2078, %v2191
  %v2198 = vadd.f32 %v2079, %v2193
  %v2199 = vadd.f32 %v2080, %v2192
  %s2200 = sld [smem:[#allocation3 + $0x74]]
  %v2201 = vstv %s2200
  %v2202 = vmul.f32 %v2201, %v2038
  %v2203 = vmul.f32 %v2201, %v2039
  %v2204 = vmul.f32 %v2201, %v2040
  %v2208 = vrot.slane %v2202, 1
  %v2209 = vrot.slane %v2203, 1
  %v2210 = vsel %vm72, %v2208, %v2209
  %v2211 = vrot.slane %v2204, 1
  %v2212 = vsel %vm72, %v2209, %v2211
  %v2216 = vadd.f32 %v2086, %v2210
  %v2217 = vadd.f32 %v2087, %v2212
  %v2218 = vadd.f32 %v2088, %v2211
  %s2219 = sld [smem:[#allocation3 + $0x88]]
  %v2220 = vstv %s2219
  %v2221 = vmul.f32 %v2220, %v2038
  %v2222 = vmul.f32 %v2220, %v2039
  %v2223 = vmul.f32 %v2220, %v2040
  %v2227 = vrot.slane %v2221, 1
  %v2228 = vrot.slane %v2222, 1
  %v2229 = vsel %vm72, %v2227, %v2228
  %v2230 = vrot.slane %v2223, 1
  %v2231 = vsel %vm72, %v2228, %v2230
  %v2235 = vadd.f32 %v2094, %v2229
  %v2236 = vadd.f32 %v2095, %v2231
  %v2237 = vadd.f32 %v2096, %v2230
  %s2238 = sld [smem:[#allocation3 + $0x9c]]
  %v2239 = vstv %s2238
  %v2240 = vmul.f32 %v2239, %v2038
  %v2241 = vmul.f32 %v2239, %v2039
  %v2242 = vmul.f32 %v2239, %v2040
  %v2246 = vrot.slane %v2240, 1
  %v2247 = vrot.slane %v2241, 1
  %v2248 = vsel %vm72, %v2246, %v2247
  %v2249 = vrot.slane %v2242, 1
  %v2250 = vsel %vm72, %v2247, %v2249
  %v2254 = vadd.f32 %v2102, %v2248
  %v2255 = vadd.f32 %v2103, %v2250
  %v2256 = vadd.f32 %v2104, %v2249
  %s2257 = sld [smem:[#allocation3 + $0x11]]
  %v2258 = vstv %s2257
  %v2259 = vmul.f32 %v2258, %v2038
  %v2260 = vmul.f32 %v2258, %v2039
  %v2261 = vmul.f32 %v2258, %v2040
  %v2265 = vrot.slane %v2259, 2
  %v2266 = vrot.slane %v2260, 2
  %v2267 = vsel %vm225, %v2265, %v2266
  %v2268 = vrot.slane %v2261, 2
  %v2269 = vsel %vm225, %v2266, %v2268
  %v2273 = vadd.f32 %v2121, %v2267
  %v2274 = vadd.f32 %v2122, %v2269
  %v2275 = vadd.f32 %v2123, %v2268
  %s2276 = sld [smem:[#allocation3 + $0x25]]
  %v2277 = vstv %s2276
  %v2278 = vmul.f32 %v2277, %v2038
  %v2279 = vmul.f32 %v2277, %v2039
  %v2280 = vmul.f32 %v2277, %v2040
  %v2284 = vrot.slane %v2278, 2
  %v2285 = vrot.slane %v2279, 2
  %v2286 = vsel %vm225, %v2284, %v2285
  %v2287 = vrot.slane %v2280, 2
  %v2288 = vsel %vm225, %v2285, %v2287
  %v2292 = vadd.f32 %v2140, %v2286
  %v2293 = vadd.f32 %v2141, %v2288
  %v2294 = vadd.f32 %v2142, %v2287
  %s2295 = sld [smem:[#allocation3 + $0x39]]
  %v2296 = vstv %s2295
  %v2297 = vmul.f32 %v2296, %v2038
  %v2298 = vmul.f32 %v2296, %v2039
  %v2299 = vmul.f32 %v2296, %v2040
  %v2303 = vrot.slane %v2297, 2
  %v2304 = vrot.slane %v2298, 2
  %v2305 = vsel %vm225, %v2303, %v2304
  %v2306 = vrot.slane %v2299, 2
  %v2307 = vsel %vm225, %v2304, %v2306
  %v2311 = vadd.f32 %v2159, %v2305
  %v2312 = vadd.f32 %v2160, %v2307
  %v2313 = vadd.f32 %v2161, %v2306
  %s2314 = sld [smem:[#allocation3 + $0x4d]]
  %v2315 = vstv %s2314
  %v2316 = vmul.f32 %v2315, %v2038
  %v2317 = vmul.f32 %v2315, %v2039
  %v2318 = vmul.f32 %v2315, %v2040
  %v2322 = vrot.slane %v2316, 2
  %v2323 = vrot.slane %v2317, 2
  %v2324 = vsel %vm225, %v2322, %v2323
  %v2325 = vrot.slane %v2318, 2
  %v2326 = vsel %vm225, %v2323, %v2325
  %v2330 = vadd.f32 %v2178, %v2324
  %v2331 = vadd.f32 %v2179, %v2326
  %v2332 = vadd.f32 %v2180, %v2325
  %s2333 = sld [smem:[#allocation3 + $0x61]]
  %v2334 = vstv %s2333
  %v2335 = vmul.f32 %v2334, %v2038
  %v2336 = vmul.f32 %v2334, %v2039
  %v2337 = vmul.f32 %v2334, %v2040
  %v2341 = vrot.slane %v2335, 2
  %v2342 = vrot.slane %v2336, 2
  %v2343 = vsel %vm225, %v2341, %v2342
  %v2344 = vrot.slane %v2337, 2
  %v2345 = vsel %vm225, %v2342, %v2344
  %v2349 = vadd.f32 %v2197, %v2343
  %v2350 = vadd.f32 %v2198, %v2345
  %v2351 = vadd.f32 %v2199, %v2344
  %s2352 = sld [smem:[#allocation3 + $0x75]]
  %v2353 = vstv %s2352
  %v2354 = vmul.f32 %v2353, %v2038
  %v2355 = vmul.f32 %v2353, %v2039
  %v2356 = vmul.f32 %v2353, %v2040
  %v2360 = vrot.slane %v2354, 2
  %v2361 = vrot.slane %v2355, 2
  %v2362 = vsel %vm225, %v2360, %v2361
  %v2363 = vrot.slane %v2356, 2
  %v2364 = vsel %vm225, %v2361, %v2363
  %v2368 = vadd.f32 %v2216, %v2362
  %v2369 = vadd.f32 %v2217, %v2364
  %v2370 = vadd.f32 %v2218, %v2363
  %s2371 = sld [smem:[#allocation3 + $0x89]]
  %v2372 = vstv %s2371
  %v2373 = vmul.f32 %v2372, %v2038
  %v2374 = vmul.f32 %v2372, %v2039
  %v2375 = vmul.f32 %v2372, %v2040
  %v2379 = vrot.slane %v2373, 2
  %v2380 = vrot.slane %v2374, 2
  %v2381 = vsel %vm225, %v2379, %v2380
  %v2382 = vrot.slane %v2375, 2
  %v2383 = vsel %vm225, %v2380, %v2382
  %v2387 = vadd.f32 %v2235, %v2381
  %v2388 = vadd.f32 %v2236, %v2383
  %v2389 = vadd.f32 %v2237, %v2382
  %s2390 = sld [smem:[#allocation3 + $0x9d]]
  %v2391 = vstv %s2390
  %v2392 = vmul.f32 %v2391, %v2038
  %v2393 = vmul.f32 %v2391, %v2039
  %v2394 = vmul.f32 %v2391, %v2040
  %v2398 = vrot.slane %v2392, 2
  %v2399 = vrot.slane %v2393, 2
  %v2400 = vsel %vm225, %v2398, %v2399
  %v2401 = vrot.slane %v2394, 2
  %v2402 = vsel %vm225, %v2399, %v2401
  %v2406 = vadd.f32 %v2254, %v2400
  %v2407 = vadd.f32 %v2255, %v2402
  %v2408 = vadd.f32 %v2256, %v2401
  %s2409 = sld [smem:[#allocation3 + $0x12]]
  %v2410 = vstv %s2409
  %v2411 = vmul.f32 %v2410, %v2038
  %v2412 = vmul.f32 %v2410, %v2039
  %v2413 = vmul.f32 %v2410, %v2040
  %v2417 = vrot.slane %v2411, 3
  %v2418 = vrot.slane %v2412, 3
  %v2419 = vsel %vm378, %v2417, %v2418
  %v2420 = vrot.slane %v2413, 3
  %v2421 = vsel %vm378, %v2418, %v2420
  %v2425 = vadd.f32 %v2273, %v2419
  %v2426 = vadd.f32 %v2274, %v2421
  %v2427 = vadd.f32 %v2275, %v2420
  %s2428 = sld [smem:[#allocation3 + $0x26]]
  %v2429 = vstv %s2428
  %v2430 = vmul.f32 %v2429, %v2038
  %v2431 = vmul.f32 %v2429, %v2039
  %v2432 = vmul.f32 %v2429, %v2040
  %v2436 = vrot.slane %v2430, 3
  %v2437 = vrot.slane %v2431, 3
  %v2438 = vsel %vm378, %v2436, %v2437
  %v2439 = vrot.slane %v2432, 3
  %v2440 = vsel %vm378, %v2437, %v2439
  %v2444 = vadd.f32 %v2292, %v2438
  %v2445 = vadd.f32 %v2293, %v2440
  %v2446 = vadd.f32 %v2294, %v2439
  %s2447 = sld [smem:[#allocation3 + $0x3a]]
  %v2448 = vstv %s2447
  %v2449 = vmul.f32 %v2448, %v2038
  %v2450 = vmul.f32 %v2448, %v2039
  %v2451 = vmul.f32 %v2448, %v2040
  %v2455 = vrot.slane %v2449, 3
  %v2456 = vrot.slane %v2450, 3
  %v2457 = vsel %vm378, %v2455, %v2456
  %v2458 = vrot.slane %v2451, 3
  %v2459 = vsel %vm378, %v2456, %v2458
  %v2463 = vadd.f32 %v2311, %v2457
  %v2464 = vadd.f32 %v2312, %v2459
  %v2465 = vadd.f32 %v2313, %v2458
  %s2466 = sld [smem:[#allocation3 + $0x4e]]
  %v2467 = vstv %s2466
  %v2468 = vmul.f32 %v2467, %v2038
  %v2469 = vmul.f32 %v2467, %v2039
  %v2470 = vmul.f32 %v2467, %v2040
  %v2474 = vrot.slane %v2468, 3
  %v2475 = vrot.slane %v2469, 3
  %v2476 = vsel %vm378, %v2474, %v2475
  %v2477 = vrot.slane %v2470, 3
  %v2478 = vsel %vm378, %v2475, %v2477
  %v2482 = vadd.f32 %v2330, %v2476
  %v2483 = vadd.f32 %v2331, %v2478
  %v2484 = vadd.f32 %v2332, %v2477
  %s2485 = sld [smem:[#allocation3 + $0x62]]
  %v2486 = vstv %s2485
  %v2487 = vmul.f32 %v2486, %v2038
  %v2488 = vmul.f32 %v2486, %v2039
  %v2489 = vmul.f32 %v2486, %v2040
  %v2493 = vrot.slane %v2487, 3
  %v2494 = vrot.slane %v2488, 3
  %v2495 = vsel %vm378, %v2493, %v2494
  %v2496 = vrot.slane %v2489, 3
  %v2497 = vsel %vm378, %v2494, %v2496
  %v2501 = vadd.f32 %v2349, %v2495
  %v2502 = vadd.f32 %v2350, %v2497
  %v2503 = vadd.f32 %v2351, %v2496
  %s2504 = sld [smem:[#allocation3 + $0x76]]
  %v2505 = vstv %s2504
  %v2506 = vmul.f32 %v2505, %v2038
  %v2507 = vmul.f32 %v2505, %v2039
  %v2508 = vmul.f32 %v2505, %v2040
  %v2512 = vrot.slane %v2506, 3
  %v2513 = vrot.slane %v2507, 3
  %v2514 = vsel %vm378, %v2512, %v2513
  %v2515 = vrot.slane %v2508, 3
  %v2516 = vsel %vm378, %v2513, %v2515
  %v2520 = vadd.f32 %v2368, %v2514
  %v2521 = vadd.f32 %v2369, %v2516
  %v2522 = vadd.f32 %v2370, %v2515
  %s2523 = sld [smem:[#allocation3 + $0x8a]]
  %v2524 = vstv %s2523
  %v2525 = vmul.f32 %v2524, %v2038
  %v2526 = vmul.f32 %v2524, %v2039
  %v2527 = vmul.f32 %v2524, %v2040
  %v2531 = vrot.slane %v2525, 3
  %v2532 = vrot.slane %v2526, 3
  %v2533 = vsel %vm378, %v2531, %v2532
  %v2534 = vrot.slane %v2527, 3
  %v2535 = vsel %vm378, %v2532, %v2534
  %v2539 = vadd.f32 %v2387, %v2533
  %v2540 = vadd.f32 %v2388, %v2535
  %v2541 = vadd.f32 %v2389, %v2534
  %s2542 = sld [smem:[#allocation3 + $0x9e]]
  %v2543 = vstv %s2542
  %v2544 = vmul.f32 %v2543, %v2038
  %v2545 = vmul.f32 %v2543, %v2039
  %v2546 = vmul.f32 %v2543, %v2040
  %v2550 = vrot.slane %v2544, 3
  %v2551 = vrot.slane %v2545, 3
  %v2552 = vsel %vm378, %v2550, %v2551
  %v2553 = vrot.slane %v2546, 3
  %v2554 = vsel %vm378, %v2551, %v2553
  %v2558 = vadd.f32 %v2406, %v2552
  %v2559 = vadd.f32 %v2407, %v2554
  %v2560 = vadd.f32 %v2408, %v2553
  %s2561 = sld [smem:[#allocation3 + $0x13]]
  %v2562 = vstv %s2561
  %v2563 = vmul.f32 %v2562, %v2038
  %v2564 = vmul.f32 %v2562, %v2039
  %v2565 = vmul.f32 %v2562, %v2040
  %v2569 = vrot.slane %v2563, 4
  %v2570 = vrot.slane %v2564, 4
  %v2571 = vsel %vm531, %v2569, %v2570
  %v2572 = vrot.slane %v2565, 4
  %v2573 = vsel %vm531, %v2570, %v2572
  %v2577 = vadd.f32 %v2425, %v2571
  %v2578 = vadd.f32 %v2426, %v2573
  %v2579 = vadd.f32 %v2427, %v2572
  %s2580 = sld [smem:[#allocation3 + $0x27]]
  %v2581 = vstv %s2580
  %v2582 = vmul.f32 %v2581, %v2038
  %v2583 = vmul.f32 %v2581, %v2039
  %v2584 = vmul.f32 %v2581, %v2040
  %v2588 = vrot.slane %v2582, 4
  %v2589 = vrot.slane %v2583, 4
  %v2590 = vsel %vm531, %v2588, %v2589
  %v2591 = vrot.slane %v2584, 4
  %v2592 = vsel %vm531, %v2589, %v2591
  %v2596 = vadd.f32 %v2444, %v2590
  %v2597 = vadd.f32 %v2445, %v2592
  %v2598 = vadd.f32 %v2446, %v2591
  %s2599 = sld [smem:[#allocation3 + $0x3b]]
  %v2600 = vstv %s2599
  %v2601 = vmul.f32 %v2600, %v2038
  %v2602 = vmul.f32 %v2600, %v2039
  %v2603 = vmul.f32 %v2600, %v2040
  %v2607 = vrot.slane %v2601, 4
  %v2608 = vrot.slane %v2602, 4
  %v2609 = vsel %vm531, %v2607, %v2608
  %v2610 = vrot.slane %v2603, 4
  %v2611 = vsel %vm531, %v2608, %v2610
  %v2615 = vadd.f32 %v2463, %v2609
  %v2616 = vadd.f32 %v2464, %v2611
  %v2617 = vadd.f32 %v2465, %v2610
  %s2618 = sld [smem:[#allocation3 + $0x4f]]
  %v2619 = vstv %s2618
  %v2620 = vmul.f32 %v2619, %v2038
  %v2621 = vmul.f32 %v2619, %v2039
  %v2622 = vmul.f32 %v2619, %v2040
  %v2626 = vrot.slane %v2620, 4
  %v2627 = vrot.slane %v2621, 4
  %v2628 = vsel %vm531, %v2626, %v2627
  %v2629 = vrot.slane %v2622, 4
  %v2630 = vsel %vm531, %v2627, %v2629
  %v2634 = vadd.f32 %v2482, %v2628
  %v2635 = vadd.f32 %v2483, %v2630
  %v2636 = vadd.f32 %v2484, %v2629
  %s2637 = sld [smem:[#allocation3 + $0x63]]
  %v2638 = vstv %s2637
  %v2639 = vmul.f32 %v2638, %v2038
  %v2640 = vmul.f32 %v2638, %v2039
  %v2641 = vmul.f32 %v2638, %v2040
  %v2645 = vrot.slane %v2639, 4
  %v2646 = vrot.slane %v2640, 4
  %v2647 = vsel %vm531, %v2645, %v2646
  %v2648 = vrot.slane %v2641, 4
  %v2649 = vsel %vm531, %v2646, %v2648
  %v2653 = vadd.f32 %v2501, %v2647
  %v2654 = vadd.f32 %v2502, %v2649
  %v2655 = vadd.f32 %v2503, %v2648
  %s2656 = sld [smem:[#allocation3 + $0x77]]
  %v2657 = vstv %s2656
  %v2658 = vmul.f32 %v2657, %v2038
  %v2659 = vmul.f32 %v2657, %v2039
  %v2660 = vmul.f32 %v2657, %v2040
  %v2664 = vrot.slane %v2658, 4
  %v2665 = vrot.slane %v2659, 4
  %v2666 = vsel %vm531, %v2664, %v2665
  %v2667 = vrot.slane %v2660, 4
  %v2668 = vsel %vm531, %v2665, %v2667
  %v2672 = vadd.f32 %v2520, %v2666
  %v2673 = vadd.f32 %v2521, %v2668
  %v2674 = vadd.f32 %v2522, %v2667
  %s2675 = sld [smem:[#allocation3 + $0x8b]]
  %v2676 = vstv %s2675
  %v2677 = vmul.f32 %v2676, %v2038
  %v2678 = vmul.f32 %v2676, %v2039
  %v2679 = vmul.f32 %v2676, %v2040
  %v2683 = vrot.slane %v2677, 4
  %v2684 = vrot.slane %v2678, 4
  %v2685 = vsel %vm531, %v2683, %v2684
  %v2686 = vrot.slane %v2679, 4
  %v2687 = vsel %vm531, %v2684, %v2686
  %v2691 = vadd.f32 %v2539, %v2685
  %v2692 = vadd.f32 %v2540, %v2687
  %v2693 = vadd.f32 %v2541, %v2686
  %s2694 = sld [smem:[#allocation3 + $0x9f]]
  %v2695 = vstv %s2694
  %v2696 = vmul.f32 %v2695, %v2038
  %v2697 = vmul.f32 %v2695, %v2039
  %v2698 = vmul.f32 %v2695, %v2040
  %v2702 = vrot.slane %v2696, 4
  %v2703 = vrot.slane %v2697, 4
  %v2704 = vsel %vm531, %v2702, %v2703
  %v2705 = vrot.slane %v2698, 4
  %v2706 = vsel %vm531, %v2703, %v2705
  %v2710 = vadd.f32 %v2558, %v2704
  %v2711 = vadd.f32 %v2559, %v2706
  %v2712 = vadd.f32 %v2560, %v2705
  %vm2713 = vcmask 1040384
  %v2714 = vsel %vm2713, %v2579, -inf
  %v2715 = vmax.f32 %v2577, %v2578
  %v2716 = vmax.f32 %v2715, %v2714
  %v2717 = vrot.slane %v2716, 4
  %v2718 = vmax.f32 %v2716, %v2717
  %v2719 = vrot.slane %v2718, 2
  %v2720 = vmax.f32 %v2718, %v2719
  %v2721 = vrot.slane %v2720, 1
  %v2722 = vmax.f32 %v2720, %v2721
  %v2723 = vsel %vm2713, %v2598, -inf
  %v2724 = vmax.f32 %v2596, %v2597
  %v2725 = vmax.f32 %v2724, %v2723
  %v2726 = vrot.slane %v2725, 4
  %v2727 = vmax.f32 %v2725, %v2726
  %v2728 = vrot.slane %v2727, 2
  %v2729 = vmax.f32 %v2727, %v2728
  %v2730 = vrot.slane %v2729, 1
  %v2731 = vmax.f32 %v2729, %v2730
  %v2732 = vsel %vm2713, %v2617, -inf
  %v2733 = vmax.f32 %v2615, %v2616
  %v2734 = vmax.f32 %v2733, %v2732
  %v2735 = vrot.slane %v2734, 4
  %v2736 = vmax.f32 %v2734, %v2735
  %v2737 = vrot.slane %v2736, 2
  %v2738 = vmax.f32 %v2736, %v2737
  %v2739 = vrot.slane %v2738, 1
  %v2740 = vmax.f32 %v2738, %v2739
  %v2741 = vsel %vm2713, %v2636, -inf
  %v2742 = vmax.f32 %v2634, %v2635
  %v2743 = vmax.f32 %v2742, %v2741
  %v2744 = vrot.slane %v2743, 4
  %v2745 = vmax.f32 %v2743, %v2744
  %v2746 = vrot.slane %v2745, 2
  %v2747 = vmax.f32 %v2745, %v2746
  %v2748 = vrot.slane %v2747, 1
  %v2749 = vmax.f32 %v2747, %v2748
  %v2750 = vsel %vm2713, %v2655, -inf
  %v2751 = vmax.f32 %v2653, %v2654
  %v2752 = vmax.f32 %v2751, %v2750
  %v2753 = vrot.slane %v2752, 4
  %v2754 = vmax.f32 %v2752, %v2753
  %v2755 = vrot.slane %v2754, 2
  %v2756 = vmax.f32 %v2754, %v2755
  %v2757 = vrot.slane %v2756, 1
  %v2758 = vmax.f32 %v2756, %v2757
  %v2759 = vsel %vm2713, %v2674, -inf
  %v2760 = vmax.f32 %v2672, %v2673
  %v2761 = vmax.f32 %v2760, %v2759
  %v2762 = vrot.slane %v2761, 4
  %v2763 = vmax.f32 %v2761, %v2762
  %v2764 = vrot.slane %v2763, 2
  %v2765 = vmax.f32 %v2763, %v2764
  %v2766 = vrot.slane %v2765, 1
  %v2767 = vmax.f32 %v2765, %v2766
  %v2768 = vsel %vm2713, %v2693, -inf
  %v2769 = vmax.f32 %v2691, %v2692
  %v2770 = vmax.f32 %v2769, %v2768
  %v2771 = vrot.slane %v2770, 4
  %v2772 = vmax.f32 %v2770, %v2771
  %v2773 = vrot.slane %v2772, 2
  %v2774 = vmax.f32 %v2772, %v2773
  %v2775 = vrot.slane %v2774, 1
  %v2776 = vmax.f32 %v2774, %v2775
  %v2777 = vsel %vm2713, %v2712, -inf
  %v2778 = vmax.f32 %v2710, %v2711
  %v2779 = vmax.f32 %v2778, %v2777
  %v2780 = vrot.slane %v2779, 4
  %v2781 = vmax.f32 %v2779, %v2780
  %v2782 = vrot.slane %v2781, 2
  %v2783 = vmax.f32 %v2781, %v2782
  %v2784 = vrot.slane %v2783, 1
  %v2785 = vmax.f32 %v2783, %v2784
  %v2786 = vsel %vm2713, %v2722, %v2731
  %vm2787 = vcmask 1041408
  %v2788 = vsel %vm2787, %v2786, %v2740
  %vm2789 = vcmask 1042432
  %v2790 = vsel %vm2789, %v2788, %v2749
  %v2791 = vsel %vm531, %v2790, %v2758
  %v2792 = vsel %vm378, %v2791, %v2767
  %v2793 = vsel %vm225, %v2792, %v2776
  %v2794 = vsel %vm72, %v2793, %v2785
  %v2795 = vld [vmem:[%s1] sm:$0xff]
  %2797 = vset.pattern.permute.xlu0 0
  %2798 = vperm.xlu0 %2797, %v2795
  %v2799 = vpop.permute.xlu0 %2798
  %v2801 = vadd.f32 %v2794, %v2799
  %v2802 = vmax.f32 %v2801, 0.0
  %2803 = vst [vmem:[%s3] sm:$0xff] %v2802
  // Predicated region
  $region10: #{cnn_forward_clb.1} parent=0 // pred_check
    _
  $region11: #{cnn_forward_clb.1} parent=0 // pred_check_branch
    %2805 = sbr.rel (0) target = $region13
  $region12: #{cnn_forward_clb.1} parent=0 // pred_region
    _
  $region13: #{cnn_forward_clb.1} parent=0 // pred_fallthru
    _
  // Predicated region
  $region14: #{cnn_forward_clb.1} parent=0 // pred_check
    _
  $region15: #{cnn_forward_clb.1} parent=0 // pred_check_branch
    %2807 = sbr.rel (0) target = $region17
  $region16: #{cnn_forward_clb.1} parent=0 // pred_region
    _
  $region17: #{cnn_forward_clb.1} parent=0 // pred_fallthru
    _

</llo_original>
